<compile_context>
chip_gen: v7x
topology: tpu7x:2x2x1
jax: 0.10.0
libtpu: 0.0.40
codegen_flags: <defaults>
</compile_context>

<pallas_src>
import functools
import numpy as np
import jax
import jax.numpy as jnp
from jax.experimental import pallas as pl
from jax.experimental.pallas import tpu as pltpu


def _dft_mats(n):
    """Ortho-normalized DFT matrices: D = (cos - i*sin) / sqrt(n)."""
    k = np.arange(n)
    ang = 2.0 * np.pi * np.outer(k, k) / n
    scale = 1.0 / np.sqrt(n)
    return (np.cos(ang) * scale).astype(np.float32), (np.sin(ang) * scale).astype(np.float32)


def _pick_batch(ph, pw, g0):
    """Slices per grid step: target ~512 rows in the fused row-DFT matmul,
    bounded by a VMEM budget and by the number of available slices."""
    target_rows = 512
    b = max(1, target_rows // max(ph, 1))
    slice_bytes = ph * pw * 4
    vmem_budget = 6 << 20                      # rough per-step working-set cap
    b = min(b, max(1, vmem_budget // (slice_bytes * 8)))
    b = min(b, g0)
    return b


def _ffl_kernel(cw_sw_ref, ch_sh_ref, pred_ref, targ_ref, out_ref, *,
                alpha, log_matrix, batch, ph, pw):
    """Processes `batch` (ph, pw) patch slices per grid step; accumulates the
    weighted frequency distance into the resident (1,1) output block."""
    first = ((pl.program_id(0) == 0) & (pl.program_id(1) == 0)
             & (pl.program_id(2) == 0))

    @pl.when(first)
    def _():
        out_ref[...] = jnp.zeros_like(out_ref)

    # difference of the batch of slices (upcast in-kernel; HBM stays native dtype)
    d = pred_ref[...].astype(jnp.float32) - targ_ref[...].astype(jnp.float32)
    d2 = d.reshape(batch * ph, pw)

    # fused row-DFT: one big MXU matmul against [Cw | Sw]  -> (B*ph, 2*pw)
    x = jnp.dot(d2, cw_sw_ref[...], preferred_element_type=jnp.float32)
    ch_sh = ch_sh_ref[...]                                   # [Ch ; Sh], (2*ph, ph)

    partial = jnp.float32(0.0)
    for b in range(batch):                                   # static unroll
        xb = x[b * ph:(b + 1) * ph, :]                       # (ph, 2*pw) = [dCw | dSw]
        # fused column-DFT: [Ch;Sh] @ [dCw|dSw]  -> quadrants A,B / C,D
        yb = jnp.dot(ch_sh, xb, preferred_element_type=jnp.float32)   # (2*ph, 2*pw)
        a_ = yb[:ph, :pw]        # Ch @ dCw
        b_ = yb[:ph, pw:]        # Ch @ dSw
        c_ = yb[ph:, :pw]        # Sh @ dCw
        d_ = yb[ph:, pw:]        # Sh @ dSw

        f_r = a_ - d_
        f_i = -(b_ + c_)
        dist = f_r * f_r + f_i * f_i                         # |F_pred - F_target|^2

        # spectrum weight, per-slice max-normalized (batch_matrix=False path)
        w = jnp.sqrt(dist)
        if alpha != 1.0:
            w = w ** alpha
        if log_matrix:
            w = jnp.log(w + 1.0)
        m = jnp.max(w)
        inv = jnp.where(m > 0.0, 1.0 / m, 0.0)               # folds the 0/0 -> 0 guard
        wn = jnp.clip(w * inv, 0.0, 1.0)

        partial = partial + jnp.sum(wn * dist)

    out_ref[...] = out_ref[...] + partial


def focal_frequency_loss(pred, target, *, loss_weight=1.0, alpha=1.0,
                         patch_factor=1, ave_spectrum=False, log_matrix=False,
                         batch_matrix=False):
    """JAX/Pallas equivalent of FocalFrequencyLoss.forward (matrix=None path)."""
    # TODO(synk): batch_matrix=True needs a global-max two-pass; not implemented.
    assert not batch_matrix, "batch_matrix=True not supported in this kernel"
    # TODO(synk): external `matrix` argument (precomputed weight) not wired in.

    N, C, H, W = pred.shape
    p = patch_factor
    assert H % p == 0 and W % p == 0
    ph, pw = H // p, W // p

    if ave_spectrum:
        # FFT is linear, so batch-mean of spectra == spectrum of batch-mean.
        pred = jnp.mean(pred.astype(jnp.float32), axis=0, keepdims=True)
        target = jnp.mean(target.astype(jnp.float32), axis=0, keepdims=True)
        N = 1

    if p > 1 and not (ph % 8 == 0 and pw % 128 == 0):
        # Small / unaligned patches: fall back to materializing patches host-side
        # (extra HBM pass), then treat as patch_factor == 1 inside the kernel.
        def to_patches(x):
            x = x.reshape(N, C, p, ph, p, pw)
            x = jnp.transpose(x, (0, 2, 4, 1, 3, 5))
            return x.reshape(N * p * p * C, ph, pw)
        pr, tg = to_patches(pred), to_patches(target)
        p_eff = 1
        Hk, Wk = ph, pw
    else:
        # Free reshape; patch windows (if any) are handled by the BlockSpec.
        pr = pred.reshape(N * C, H, W)
        tg = target.reshape(N * C, H, W)
        p_eff = p
        Hk, Wk = H, W

    g0 = pr.shape[0]
    n_slices = g0 * p_eff * p_eff

    B = _pick_batch(ph, pw, g0)
    g_pad = pl.cdiv(g0, B) * B
    if g_pad != g0:
        pad = g_pad - g0
        # zero slices contribute exactly 0 to the accumulated loss
        pr = jnp.concatenate([pr, jnp.zeros((pad, Hk, Wk), pr.dtype)], axis=0)
        tg = jnp.concatenate([tg, jnp.zeros((pad, Hk, Wk), tg.dtype)], axis=0)
    nb = g_pad // B

    Cw, Sw = _dft_mats(pw)
    Ch, Sh = _dft_mats(ph)
    cw_sw = jnp.asarray(np.concatenate([Cw, Sw], axis=1))    # (pw, 2*pw)
    ch_sh = jnp.asarray(np.concatenate([Ch, Sh], axis=0))    # (2*ph, ph)

    kernel = functools.partial(_ffl_kernel, alpha=alpha, log_matrix=log_matrix,
                               batch=B, ph=ph, pw=pw)

    total = pl.pallas_call(
        kernel,
        out_shape=jax.ShapeDtypeStruct((1, 1), jnp.float32),
        grid_spec=pltpu.PrefetchScalarGridSpec(
            num_scalar_prefetch=0,
            grid=(nb, p_eff, p_eff),
            in_specs=[
                pl.BlockSpec((pw, 2 * pw), lambda b, i, j: (0, 0)),   # [Cw|Sw]
                pl.BlockSpec((2 * ph, ph), lambda b, i, j: (0, 0)),   # [Ch;Sh]
                pl.BlockSpec((B, ph, pw), lambda b, i, j: (b, i, j)), # pred slices
                pl.BlockSpec((B, ph, pw), lambda b, i, j: (b, i, j)), # target slices
            ],
            out_specs=pl.BlockSpec((1, 1), lambda b, i, j: (0, 0)),   # resident acc
        ),
        compiler_params=pltpu.CompilerParams(
            dimension_semantics=("arbitrary", "arbitrary", "arbitrary")),
    )(cw_sw, ch_sh, pr, tg)

    return total[0, 0] / (n_slices * ph * pw) * loss_weight


def _reference_ffl(pred, target, *, loss_weight=1.0, alpha=1.0, patch_factor=1,
                   ave_spectrum=False, log_matrix=False):
    """Pure-JAX reference matching the PyTorch module (batch_matrix=False)."""
    N, C, H, W = pred.shape
    p = patch_factor
    ph, pw = H // p, W // p

    def to_patches(x):
        x = x.reshape(N, C, p, ph, p, pw)
        x = jnp.transpose(x, (0, 2, 4, 1, 3, 5))
        return x.reshape(N, p * p, C, ph, pw)

    pf = jnp.fft.fft2(to_patches(pred), norm="ortho")
    tf = jnp.fft.fft2(to_patches(target), norm="ortho")
    if ave_spectrum:
        pf = jnp.mean(pf, axis=0, keepdims=True)
        tf = jnp.mean(tf, axis=0, keepdims=True)
    d = pf - tf
    dist = jnp.real(d) ** 2 + jnp.imag(d) ** 2
    w = jnp.sqrt(dist) ** alpha
    if log_matrix:
        w = jnp.log(w + 1.0)
    w = w / jnp.max(w, axis=(-2, -1), keepdims=True)
    w = jnp.where(jnp.isnan(w), 0.0, w)
    w = jnp.clip(w, 0.0, 1.0)
    return jnp.mean(w * dist) * loss_weight


if __name__ == "__main__":
    key = jax.random.PRNGKey(0)
    k1, k2 = jax.random.split(key)
    N, C, H, W = 2, 4, 16, 16
    pred = jax.random.normal(k1, (N, C, H, W), dtype=jnp.float32)
    target = jax.random.normal(k2, (N, C, H, W), dtype=jnp.float32)

    # default config (patch_factor=1)
    loss = jax.block_until_ready(focal_frequency_loss(pred, target, loss_weight=1.0, alpha=1.0))
    ref = jax.block_until_ready(_reference_ffl(pred, target))
    assert np.isfinite(float(loss))
    np.testing.assert_allclose(float(loss), float(ref), rtol=1e-4, atol=1e-5)

    # patch_factor=2 (exercises the small-patch fallback path)
    loss2 = jax.block_until_ready(focal_frequency_loss(pred, target, patch_factor=2))
    ref2 = jax.block_until_ready(_reference_ffl(pred, target, patch_factor=2))
    np.testing.assert_allclose(float(loss2), float(ref2), rtol=1e-4, atol=1e-5)

    print("KERNEL_OK")
</pallas_src>

<mosaic_0001>
module attributes {stable_mosaic.version = 11 : i64} {
  func.func @_ffl_kernel(%arg0: i32, %arg1: i32, %arg2: i32, %arg3: memref<16x32xf32, #tpu.memory_space<vmem>>, %arg4: memref<32x16xf32, #tpu.memory_space<vmem>>, %arg5: memref<8x16x16xf32, #tpu.memory_space<vmem>>, %arg6: memref<8x16x16xf32, #tpu.memory_space<vmem>>, %arg7: memref<1x1xf32, #tpu.memory_space<vmem>>) attributes {dimension_semantics = [#tpu.dimension_semantics<arbitrary>, #tpu.dimension_semantics<arbitrary>, #tpu.dimension_semantics<arbitrary>], iteration_bounds = array<i64: 1, 1, 1>, scalar_prefetch = 0 : i64, scratch_operands = 0 : i64, tpu.core_type = #tpu.core_type<tc>, window_params = [{pipeline_mode = #tpu.pipeline_mode<synchronous>, transform_indices = @transform_0, window_bounds = array<i64: 16, 32>}, {pipeline_mode = #tpu.pipeline_mode<synchronous>, transform_indices = @transform_1, window_bounds = array<i64: 32, 16>}, {transform_indices = @transform_2, window_bounds = array<i64: 8, 16, 16>}, {transform_indices = @transform_3, window_bounds = array<i64: 8, 16, 16>}, {pipeline_mode = #tpu.pipeline_mode<synchronous>, transform_indices = @transform_4, window_bounds = array<i64: 1, 1>}]} {
    %c0_i32 = arith.constant 0 : i32
    %0 = arith.cmpi eq, %arg0, %c0_i32 : i32
    %c0_i32_0 = arith.constant 0 : i32
    %1 = arith.cmpi eq, %arg1, %c0_i32_0 : i32
    %2 = arith.andi %0, %1 : i1
    %c0_i32_1 = arith.constant 0 : i32
    %3 = arith.cmpi eq, %arg2, %c0_i32_1 : i32
    %4 = arith.andi %2, %3 : i1
    %5 = arith.extui %4 : i1 to i32
    %c0_i32_2 = arith.constant 0 : i32
    %6 = arith.cmpi ne, %5, %c0_i32_2 : i32
    scf.if %6 {
      %cst_89 = arith.constant 0.000000e+00 : f32
      %282 = vector.broadcast %cst_89 : f32 to vector<1x1xf32>
      %c0_90 = arith.constant 0 : index
      %c0_91 = arith.constant 0 : index
      %283 = vector.load %arg7[%c0_90, %c0_91] : memref<1x1xf32, #tpu.memory_space<vmem>>, vector<1x1xf32>
      tpu.vector_store %arg7[%c0_90, %c0_91], %282 {strides = array<i32>} : memref<1x1xf32, #tpu.memory_space<vmem>>, vector<1x1xf32>,
    } else {
    }
    %c0 = arith.constant 0 : index
    %c0_3 = arith.constant 0 : index
    %c0_4 = arith.constant 0 : index
    %7 = vector.load %arg5[%c0, %c0_3, %c0_4] : memref<8x16x16xf32, #tpu.memory_space<vmem>>, vector<8x16x16xf32>
    %c0_5 = arith.constant 0 : index
    %c0_6 = arith.constant 0 : index
    %c0_7 = arith.constant 0 : index
    %8 = vector.load %arg6[%c0_5, %c0_6, %c0_7] : memref<8x16x16xf32, #tpu.memory_space<vmem>>, vector<8x16x16xf32>
    %9 = arith.subf %7, %8 : vector<8x16x16xf32>
    %10 = vector.shape_cast %9 : vector<8x16x16xf32> to vector<128x16xf32>
    %c0_8 = arith.constant 0 : index
    %c0_9 = arith.constant 0 : index
    %11 = vector.load %arg3[%c0_8, %c0_9] : memref<16x32xf32, #tpu.memory_space<vmem>>, vector<16x32xf32>
    %cst = arith.constant dense<0.000000e+00> : vector<128x32xf32>
    %12 = tpu.matmul %10, %11, %cst {dimension_numbers = #tpu.dot_dimension_numbers<[1], [0], [0], [1], [0, 0, 1, 1], [], []>} : vector<128x16xf32>, vector<16x32xf32>, vector<128x32xf32> -> vector<128x32xf32>
    %c0_10 = arith.constant 0 : index
    %c0_11 = arith.constant 0 : index
    %13 = vector.load %arg4[%c0_10, %c0_11] : memref<32x16xf32, #tpu.memory_space<vmem>>, vector<32x16xf32>
    %14 = vector.extract_strided_slice %12 {offsets = [0, 0], sizes = [16, 32], strides = [1, 1]} : vector<128x32xf32> to vector<16x32xf32>
    %cst_12 = arith.constant dense<0.000000e+00> : vector<32x32xf32>
    %15 = tpu.matmul %13, %14, %cst_12 {dimension_numbers = #tpu.dot_dimension_numbers<[1], [0], [0], [1], [0, 0, 1, 1], [], []>} : vector<32x16xf32>, vector<16x32xf32>, vector<32x32xf32> -> vector<32x32xf32>
    %16 = vector.extract_strided_slice %15 {offsets = [0, 0], sizes = [16, 16], strides = [1, 1]} : vector<32x32xf32> to vector<16x16xf32>
    %17 = vector.extract_strided_slice %15 {offsets = [0, 16], sizes = [16, 16], strides = [1, 1]} : vector<32x32xf32> to vector<16x16xf32>
    %18 = vector.extract_strided_slice %15 {offsets = [16, 0], sizes = [16, 16], strides = [1, 1]} : vector<32x32xf32> to vector<16x16xf32>
    %19 = vector.extract_strided_slice %15 {offsets = [16, 16], sizes = [16, 16], strides = [1, 1]} : vector<32x32xf32> to vector<16x16xf32>
    %20 = arith.subf %16, %19 : vector<16x16xf32>
    %21 = arith.addf %17, %18 : vector<16x16xf32>
    %cst_13 = arith.constant 0.000000e+00 : f32
    %22 = vector.broadcast %cst_13 : f32 to vector<16x16xf32>
    %23 = arith.subf %22, %21 : vector<16x16xf32>
    %24 = arith.mulf %20, %20 : vector<16x16xf32>
    %25 = arith.mulf %23, %23 : vector<16x16xf32>
    %26 = arith.addf %24, %25 : vector<16x16xf32>
    %27 = math.sqrt %26 : vector<16x16xf32>
    %28 = vector.shape_cast %27 : vector<16x16xf32> to vector<1x16x16xf32>
    %cst_14 = arith.constant dense<0xFF800000> : vector<1xf32>
    %29 = vector.multi_reduction <maximumf>, %28, %cst_14 [1, 2] : vector<1x16x16xf32> to vector<1xf32>
    %30 = vector.shape_cast %29 : vector<1xf32> to vector<1x1x1xf32>
    %31 = vector.extract %30[0, 0, 0] : f32 from vector<1x1x1xf32>
    %cst_15 = arith.constant 0.000000e+00 : f32
    %32 = arith.cmpf ogt, %31, %cst_15 : f32
    %cst_16 = arith.constant 1.000000e+00 : f32
    %33 = arith.divf %cst_16, %31 : f32
    %cst_17 = arith.constant 0.000000e+00 : f32
    %34 = arith.select %32, %33, %cst_17 : f32
    %35 = vector.broadcast %34 : f32 to vector<16x16xf32>
    %36 = arith.mulf %27, %35 : vector<16x16xf32>
    %cst_18 = arith.constant 0.000000e+00 : f32
    %cst_19 = arith.constant 1.000000e+00 : f32
    %37 = vector.broadcast %cst_18 : f32 to vector<16x16xf32>
    %38 = arith.maximumf %37, %36 : vector<16x16xf32>
    %39 = vector.broadcast %cst_19 : f32 to vector<16x16xf32>
    %40 = arith.minimumf %39, %38 : vector<16x16xf32>
    %41 = arith.mulf %40, %26 : vector<16x16xf32>
    %42 = vector.shape_cast %41 : vector<16x16xf32> to vector<1x16x16xf32>
    %cst_20 = arith.constant dense<0.000000e+00> : vector<1xf32>
    %43 = vector.multi_reduction <add>, %42, %cst_20 [1, 2] : vector<1x16x16xf32> to vector<1xf32>
    %44 = vector.shape_cast %43 : vector<1xf32> to vector<1x1x1xf32>
    %45 = vector.extract %44[0, 0, 0] : f32 from vector<1x1x1xf32>
    %cst_21 = arith.constant 0.000000e+00 : f32
    %46 = arith.addf %cst_21, %45 : f32
    %47 = vector.extract_strided_slice %12 {offsets = [16, 0], sizes = [16, 32], strides = [1, 1]} : vector<128x32xf32> to vector<16x32xf32>
    %cst_22 = arith.constant dense<0.000000e+00> : vector<32x32xf32>
    %48 = tpu.matmul %13, %47, %cst_22 {dimension_numbers = #tpu.dot_dimension_numbers<[1], [0], [0], [1], [0, 0, 1, 1], [], []>} : vector<32x16xf32>, vector<16x32xf32>, vector<32x32xf32> -> vector<32x32xf32>
    %49 = vector.extract_strided_slice %48 {offsets = [0, 0], sizes = [16, 16], strides = [1, 1]} : vector<32x32xf32> to vector<16x16xf32>
    %50 = vector.extract_strided_slice %48 {offsets = [0, 16], sizes = [16, 16], strides = [1, 1]} : vector<32x32xf32> to vector<16x16xf32>
    %51 = vector.extract_strided_slice %48 {offsets = [16, 0], sizes = [16, 16], strides = [1, 1]} : vector<32x32xf32> to vector<16x16xf32>
    %52 = vector.extract_strided_slice %48 {offsets = [16, 16], sizes = [16, 16], strides = [1, 1]} : vector<32x32xf32> to vector<16x16xf32>
    %53 = arith.subf %49, %52 : vector<16x16xf32>
    %54 = arith.addf %50, %51 : vector<16x16xf32>
    %cst_23 = arith.constant 0.000000e+00 : f32
    %55 = vector.broadcast %cst_23 : f32 to vector<16x16xf32>
    %56 = arith.subf %55, %54 : vector<16x16xf32>
    %57 = arith.mulf %53, %53 : vector<16x16xf32>
    %58 = arith.mulf %56, %56 : vector<16x16xf32>
    %59 = arith.addf %57, %58 : vector<16x16xf32>
    %60 = math.sqrt %59 : vector<16x16xf32>
    %61 = vector.shape_cast %60 : vector<16x16xf32> to vector<1x16x16xf32>
    %cst_24 = arith.constant dense<0xFF800000> : vector<1xf32>
    %62 = vector.multi_reduction <maximumf>, %61, %cst_24 [1, 2] : vector<1x16x16xf32> to vector<1xf32>
    %63 = vector.shape_cast %62 : vector<1xf32> to vector<1x1x1xf32>
    %64 = vector.extract %63[0, 0, 0] : f32 from vector<1x1x1xf32>
    %cst_25 = arith.constant 0.000000e+00 : f32
    %65 = arith.cmpf ogt, %64, %cst_25 : f32
    %cst_26 = arith.constant 1.000000e+00 : f32
    %66 = arith.divf %cst_26, %64 : f32
    %cst_27 = arith.constant 0.000000e+00 : f32
    %67 = arith.select %65, %66, %cst_27 : f32
    %68 = vector.broadcast %67 : f32 to vector<16x16xf32>
    %69 = arith.mulf %60, %68 : vector<16x16xf32>
    %cst_28 = arith.constant 0.000000e+00 : f32
    %cst_29 = arith.constant 1.000000e+00 : f32
    %70 = vector.broadcast %cst_28 : f32 to vector<16x16xf32>
    %71 = arith.maximumf %70, %69 : vector<16x16xf32>
    %72 = vector.broadcast %cst_29 : f32 to vector<16x16xf32>
    %73 = arith.minimumf %72, %71 : vector<16x16xf32>
    %74 = arith.mulf %73, %59 : vector<16x16xf32>
    %75 = vector.shape_cast %74 : vector<16x16xf32> to vector<1x16x16xf32>
    %cst_30 = arith.constant dense<0.000000e+00> : vector<1xf32>
    %76 = vector.multi_reduction <add>, %75, %cst_30 [1, 2] : vector<1x16x16xf32> to vector<1xf32>
    %77 = vector.shape_cast %76 : vector<1xf32> to vector<1x1x1xf32>
    %78 = vector.extract %77[0, 0, 0] : f32 from vector<1x1x1xf32>
    %79 = arith.addf %46, %78 : f32
    %80 = vector.extract_strided_slice %12 {offsets = [32, 0], sizes = [16, 32], strides = [1, 1]} : vector<128x32xf32> to vector<16x32xf32>
    %cst_31 = arith.constant dense<0.000000e+00> : vector<32x32xf32>
    %81 = tpu.matmul %13, %80, %cst_31 {dimension_numbers = #tpu.dot_dimension_numbers<[1], [0], [0], [1], [0, 0, 1, 1], [], []>} : vector<32x16xf32>, vector<16x32xf32>, vector<32x32xf32> -> vector<32x32xf32>
    %82 = vector.extract_strided_slice %81 {offsets = [0, 0], sizes = [16, 16], strides = [1, 1]} : vector<32x32xf32> to vector<16x16xf32>
    %83 = vector.extract_strided_slice %81 {offsets = [0, 16], sizes = [16, 16], strides = [1, 1]} : vector<32x32xf32> to vector<16x16xf32>
    %84 = vector.extract_strided_slice %81 {offsets = [16, 0], sizes = [16, 16], strides = [1, 1]} : vector<32x32xf32> to vector<16x16xf32>
    %85 = vector.extract_strided_slice %81 {offsets = [16, 16], sizes = [16, 16], strides = [1, 1]} : vector<32x32xf32> to vector<16x16xf32>
    %86 = arith.subf %82, %85 : vector<16x16xf32>
    %87 = arith.addf %83, %84 : vector<16x16xf32>
    %cst_32 = arith.constant 0.000000e+00 : f32
    %88 = vector.broadcast %cst_32 : f32 to vector<16x16xf32>
    %89 = arith.subf %88, %87 : vector<16x16xf32>
    %90 = arith.mulf %86, %86 : vector<16x16xf32>
    %91 = arith.mulf %89, %89 : vector<16x16xf32>
    %92 = arith.addf %90, %91 : vector<16x16xf32>
    %93 = math.sqrt %92 : vector<16x16xf32>
    %94 = vector.shape_cast %93 : vector<16x16xf32> to vector<1x16x16xf32>
    %cst_33 = arith.constant dense<0xFF800000> : vector<1xf32>
    %95 = vector.multi_reduction <maximumf>, %94, %cst_33 [1, 2] : vector<1x16x16xf32> to vector<1xf32>
    %96 = vector.shape_cast %95 : vector<1xf32> to vector<1x1x1xf32>
    %97 = vector.extract %96[0, 0, 0] : f32 from vector<1x1x1xf32>
    %cst_34 = arith.constant 0.000000e+00 : f32
    %98 = arith.cmpf ogt, %97, %cst_34 : f32
    %cst_35 = arith.constant 1.000000e+00 : f32
    %99 = arith.divf %cst_35, %97 : f32
    %cst_36 = arith.constant 0.000000e+00 : f32
    %100 = arith.select %98, %99, %cst_36 : f32
    %101 = vector.broadcast %100 : f32 to vector<16x16xf32>
    %102 = arith.mulf %93, %101 : vector<16x16xf32>
    %cst_37 = arith.constant 0.000000e+00 : f32
    %cst_38 = arith.constant 1.000000e+00 : f32
    %103 = vector.broadcast %cst_37 : f32 to vector<16x16xf32>
    %104 = arith.maximumf %103, %102 : vector<16x16xf32>
    %105 = vector.broadcast %cst_38 : f32 to vector<16x16xf32>
    %106 = arith.minimumf %105, %104 : vector<16x16xf32>
    %107 = arith.mulf %106, %92 : vector<16x16xf32>
    %108 = vector.shape_cast %107 : vector<16x16xf32> to vector<1x16x16xf32>
    %cst_39 = arith.constant dense<0.000000e+00> : vector<1xf32>
    %109 = vector.multi_reduction <add>, %108, %cst_39 [1, 2] : vector<1x16x16xf32> to vector<1xf32>
    %110 = vector.shape_cast %109 : vector<1xf32> to vector<1x1x1xf32>
    %111 = vector.extract %110[0, 0, 0] : f32 from vector<1x1x1xf32>
    %112 = arith.addf %79, %111 : f32
    %113 = vector.extract_strided_slice %12 {offsets = [48, 0], sizes = [16, 32], strides = [1, 1]} : vector<128x32xf32> to vector<16x32xf32>
    %cst_40 = arith.constant dense<0.000000e+00> : vector<32x32xf32>
    %114 = tpu.matmul %13, %113, %cst_40 {dimension_numbers = #tpu.dot_dimension_numbers<[1], [0], [0], [1], [0, 0, 1, 1], [], []>} : vector<32x16xf32>, vector<16x32xf32>, vector<32x32xf32> -> vector<32x32xf32>
    %115 = vector.extract_strided_slice %114 {offsets = [0, 0], sizes = [16, 16], strides = [1, 1]} : vector<32x32xf32> to vector<16x16xf32>
    %116 = vector.extract_strided_slice %114 {offsets = [0, 16], sizes = [16, 16], strides = [1, 1]} : vector<32x32xf32> to vector<16x16xf32>
    %117 = vector.extract_strided_slice %114 {offsets = [16, 0], sizes = [16, 16], strides = [1, 1]} : vector<32x32xf32> to vector<16x16xf32>
    %118 = vector.extract_strided_slice %114 {offsets = [16, 16], sizes = [16, 16], strides = [1, 1]} : vector<32x32xf32> to vector<16x16xf32>
    %119 = arith.subf %115, %118 : vector<16x16xf32>
    %120 = arith.addf %116, %117 : vector<16x16xf32>
    %cst_41 = arith.constant 0.000000e+00 : f32
    %121 = vector.broadcast %cst_41 : f32 to vector<16x16xf32>
    %122 = arith.subf %121, %120 : vector<16x16xf32>
    %123 = arith.mulf %119, %119 : vector<16x16xf32>
    %124 = arith.mulf %122, %122 : vector<16x16xf32>
    %125 = arith.addf %123, %124 : vector<16x16xf32>
    %126 = math.sqrt %125 : vector<16x16xf32>
    %127 = vector.shape_cast %126 : vector<16x16xf32> to vector<1x16x16xf32>
    %cst_42 = arith.constant dense<0xFF800000> : vector<1xf32>
    %128 = vector.multi_reduction <maximumf>, %127, %cst_42 [1, 2] : vector<1x16x16xf32> to vector<1xf32>
    %129 = vector.shape_cast %128 : vector<1xf32> to vector<1x1x1xf32>
    %130 = vector.extract %129[0, 0, 0] : f32 from vector<1x1x1xf32>
    %cst_43 = arith.constant 0.000000e+00 : f32
    %131 = arith.cmpf ogt, %130, %cst_43 : f32
    %cst_44 = arith.constant 1.000000e+00 : f32
    %132 = arith.divf %cst_44, %130 : f32
    %cst_45 = arith.constant 0.000000e+00 : f32
    %133 = arith.select %131, %132, %cst_45 : f32
    %134 = vector.broadcast %133 : f32 to vector<16x16xf32>
    %135 = arith.mulf %126, %134 : vector<16x16xf32>
    %cst_46 = arith.constant 0.000000e+00 : f32
    %cst_47 = arith.constant 1.000000e+00 : f32
    %136 = vector.broadcast %cst_46 : f32 to vector<16x16xf32>
    %137 = arith.maximumf %136, %135 : vector<16x16xf32>
    %138 = vector.broadcast %cst_47 : f32 to vector<16x16xf32>
    %139 = arith.minimumf %138, %137 : vector<16x16xf32>
    %140 = arith.mulf %139, %125 : vector<16x16xf32>
    %141 = vector.shape_cast %140 : vector<16x16xf32> to vector<1x16x16xf32>
    %cst_48 = arith.constant dense<0.000000e+00> : vector<1xf32>
    %142 = vector.multi_reduction <add>, %141, %cst_48 [1, 2] : vector<1x16x16xf32> to vector<1xf32>
    %143 = vector.shape_cast %142 : vector<1xf32> to vector<1x1x1xf32>
    %144 = vector.extract %143[0, 0, 0] : f32 from vector<1x1x1xf32>
    %145 = arith.addf %112, %144 : f32
    %146 = vector.extract_strided_slice %12 {offsets = [64, 0], sizes = [16, 32], strides = [1, 1]} : vector<128x32xf32> to vector<16x32xf32>
    %cst_49 = arith.constant dense<0.000000e+00> : vector<32x32xf32>
    %147 = tpu.matmul %13, %146, %cst_49 {dimension_numbers = #tpu.dot_dimension_numbers<[1], [0], [0], [1], [0, 0, 1, 1], [], []>} : vector<32x16xf32>, vector<16x32xf32>, vector<32x32xf32> -> vector<32x32xf32>
    %148 = vector.extract_strided_slice %147 {offsets = [0, 0], sizes = [16, 16], strides = [1, 1]} : vector<32x32xf32> to vector<16x16xf32>
    %149 = vector.extract_strided_slice %147 {offsets = [0, 16], sizes = [16, 16], strides = [1, 1]} : vector<32x32xf32> to vector<16x16xf32>
    %150 = vector.extract_strided_slice %147 {offsets = [16, 0], sizes = [16, 16], strides = [1, 1]} : vector<32x32xf32> to vector<16x16xf32>
    %151 = vector.extract_strided_slice %147 {offsets = [16, 16], sizes = [16, 16], strides = [1, 1]} : vector<32x32xf32> to vector<16x16xf32>
    %152 = arith.subf %148, %151 : vector<16x16xf32>
    %153 = arith.addf %149, %150 : vector<16x16xf32>
    %cst_50 = arith.constant 0.000000e+00 : f32
    %154 = vector.broadcast %cst_50 : f32 to vector<16x16xf32>
    %155 = arith.subf %154, %153 : vector<16x16xf32>
    %156 = arith.mulf %152, %152 : vector<16x16xf32>
    %157 = arith.mulf %155, %155 : vector<16x16xf32>
    %158 = arith.addf %156, %157 : vector<16x16xf32>
    %159 = math.sqrt %158 : vector<16x16xf32>
    %160 = vector.shape_cast %159 : vector<16x16xf32> to vector<1x16x16xf32>
    %cst_51 = arith.constant dense<0xFF800000> : vector<1xf32>
    %161 = vector.multi_reduction <maximumf>, %160, %cst_51 [1, 2] : vector<1x16x16xf32> to vector<1xf32>
    %162 = vector.shape_cast %161 : vector<1xf32> to vector<1x1x1xf32>
    %163 = vector.extract %162[0, 0, 0] : f32 from vector<1x1x1xf32>
    %cst_52 = arith.constant 0.000000e+00 : f32
    %164 = arith.cmpf ogt, %163, %cst_52 : f32
    %cst_53 = arith.constant 1.000000e+00 : f32
    %165 = arith.divf %cst_53, %163 : f32
    %cst_54 = arith.constant 0.000000e+00 : f32
    %166 = arith.select %164, %165, %cst_54 : f32
    %167 = vector.broadcast %166 : f32 to vector<16x16xf32>
    %168 = arith.mulf %159, %167 : vector<16x16xf32>
    %cst_55 = arith.constant 0.000000e+00 : f32
    %cst_56 = arith.constant 1.000000e+00 : f32
    %169 = vector.broadcast %cst_55 : f32 to vector<16x16xf32>
    %170 = arith.maximumf %169, %168 : vector<16x16xf32>
    %171 = vector.broadcast %cst_56 : f32 to vector<16x16xf32>
    %172 = arith.minimumf %171, %170 : vector<16x16xf32>
    %173 = arith.mulf %172, %158 : vector<16x16xf32>
    %174 = vector.shape_cast %173 : vector<16x16xf32> to vector<1x16x16xf32>
    %cst_57 = arith.constant dense<0.000000e+00> : vector<1xf32>
    %175 = vector.multi_reduction <add>, %174, %cst_57 [1, 2] : vector<1x16x16xf32> to vector<1xf32>
    %176 = vector.shape_cast %175 : vector<1xf32> to vector<1x1x1xf32>
    %177 = vector.extract %176[0, 0, 0] : f32 from vector<1x1x1xf32>
    %178 = arith.addf %145, %177 : f32
    %179 = vector.extract_strided_slice %12 {offsets = [80, 0], sizes = [16, 32], strides = [1, 1]} : vector<128x32xf32> to vector<16x32xf32>
    %cst_58 = arith.constant dense<0.000000e+00> : vector<32x32xf32>
    %180 = tpu.matmul %13, %179, %cst_58 {dimension_numbers = #tpu.dot_dimension_numbers<[1], [0], [0], [1], [0, 0, 1, 1], [], []>} : vector<32x16xf32>, vector<16x32xf32>, vector<32x32xf32> -> vector<32x32xf32>
    %181 = vector.extract_strided_slice %180 {offsets = [0, 0], sizes = [16, 16], strides = [1, 1]} : vector<32x32xf32> to vector<16x16xf32>
    %182 = vector.extract_strided_slice %180 {offsets = [0, 16], sizes = [16, 16], strides = [1, 1]} : vector<32x32xf32> to vector<16x16xf32>
    %183 = vector.extract_strided_slice %180 {offsets = [16, 0], sizes = [16, 16], strides = [1, 1]} : vector<32x32xf32> to vector<16x16xf32>
    %184 = vector.extract_strided_slice %180 {offsets = [16, 16], sizes = [16, 16], strides = [1, 1]} : vector<32x32xf32> to vector<16x16xf32>
    %185 = arith.subf %181, %184 : vector<16x16xf32>
    %186 = arith.addf %182, %183 : vector<16x16xf32>
    %cst_59 = arith.constant 0.000000e+00 : f32
    %187 = vector.broadcast %cst_59 : f32 to vector<16x16xf32>
    %188 = arith.subf %187, %186 : vector<16x16xf32>
    %189 = arith.mulf %185, %185 : vector<16x16xf32>
    %190 = arith.mulf %188, %188 : vector<16x16xf32>
    %191 = arith.addf %189, %190 : vector<16x16xf32>
    %192 = math.sqrt %191 : vector<16x16xf32>
    %193 = vector.shape_cast %192 : vector<16x16xf32> to vector<1x16x16xf32>
    %cst_60 = arith.constant dense<0xFF800000> : vector<1xf32>
    %194 = vector.multi_reduction <maximumf>, %193, %cst_60 [1, 2] : vector<1x16x16xf32> to vector<1xf32>
    %195 = vector.shape_cast %194 : vector<1xf32> to vector<1x1x1xf32>
    %196 = vector.extract %195[0, 0, 0] : f32 from vector<1x1x1xf32>
    %cst_61 = arith.constant 0.000000e+00 : f32
    %197 = arith.cmpf ogt, %196, %cst_61 : f32
    %cst_62 = arith.constant 1.000000e+00 : f32
    %198 = arith.divf %cst_62, %196 : f32
    %cst_63 = arith.constant 0.000000e+00 : f32
    %199 = arith.select %197, %198, %cst_63 : f32
    %200 = vector.broadcast %199 : f32 to vector<16x16xf32>
    %201 = arith.mulf %192, %200 : vector<16x16xf32>
    %cst_64 = arith.constant 0.000000e+00 : f32
    %cst_65 = arith.constant 1.000000e+00 : f32
    %202 = vector.broadcast %cst_64 : f32 to vector<16x16xf32>
    %203 = arith.maximumf %202, %201 : vector<16x16xf32>
    %204 = vector.broadcast %cst_65 : f32 to vector<16x16xf32>
    %205 = arith.minimumf %204, %203 : vector<16x16xf32>
    %206 = arith.mulf %205, %191 : vector<16x16xf32>
    %207 = vector.shape_cast %206 : vector<16x16xf32> to vector<1x16x16xf32>
    %cst_66 = arith.constant dense<0.000000e+00> : vector<1xf32>
    %208 = vector.multi_reduction <add>, %207, %cst_66 [1, 2] : vector<1x16x16xf32> to vector<1xf32>
    %209 = vector.shape_cast %208 : vector<1xf32> to vector<1x1x1xf32>
    %210 = vector.extract %209[0, 0, 0] : f32 from vector<1x1x1xf32>
    %211 = arith.addf %178, %210 : f32
    %212 = vector.extract_strided_slice %12 {offsets = [96, 0], sizes = [16, 32], strides = [1, 1]} : vector<128x32xf32> to vector<16x32xf32>
    %cst_67 = arith.constant dense<0.000000e+00> : vector<32x32xf32>
    %213 = tpu.matmul %13, %212, %cst_67 {dimension_numbers = #tpu.dot_dimension_numbers<[1], [0], [0], [1], [0, 0, 1, 1], [], []>} : vector<32x16xf32>, vector<16x32xf32>, vector<32x32xf32> -> vector<32x32xf32>
    %214 = vector.extract_strided_slice %213 {offsets = [0, 0], sizes = [16, 16], strides = [1, 1]} : vector<32x32xf32> to vector<16x16xf32>
    %215 = vector.extract_strided_slice %213 {offsets = [0, 16], sizes = [16, 16], strides = [1, 1]} : vector<32x32xf32> to vector<16x16xf32>
    %216 = vector.extract_strided_slice %213 {offsets = [16, 0], sizes = [16, 16], strides = [1, 1]} : vector<32x32xf32> to vector<16x16xf32>
    %217 = vector.extract_strided_slice %213 {offsets = [16, 16], sizes = [16, 16], strides = [1, 1]} : vector<32x32xf32> to vector<16x16xf32>
    %218 = arith.subf %214, %217 : vector<16x16xf32>
    %219 = arith.addf %215, %216 : vector<16x16xf32>
    %cst_68 = arith.constant 0.000000e+00 : f32
    %220 = vector.broadcast %cst_68 : f32 to vector<16x16xf32>
    %221 = arith.subf %220, %219 : vector<16x16xf32>
    %222 = arith.mulf %218, %218 : vector<16x16xf32>
    %223 = arith.mulf %221, %221 : vector<16x16xf32>
    %224 = arith.addf %222, %223 : vector<16x16xf32>
    %225 = math.sqrt %224 : vector<16x16xf32>
    %226 = vector.shape_cast %225 : vector<16x16xf32> to vector<1x16x16xf32>
    %cst_69 = arith.constant dense<0xFF800000> : vector<1xf32>
    %227 = vector.multi_reduction <maximumf>, %226, %cst_69 [1, 2] : vector<1x16x16xf32> to vector<1xf32>
    %228 = vector.shape_cast %227 : vector<1xf32> to vector<1x1x1xf32>
    %229 = vector.extract %228[0, 0, 0] : f32 from vector<1x1x1xf32>
    %cst_70 = arith.constant 0.000000e+00 : f32
    %230 = arith.cmpf ogt, %229, %cst_70 : f32
    %cst_71 = arith.constant 1.000000e+00 : f32
    %231 = arith.divf %cst_71, %229 : f32
    %cst_72 = arith.constant 0.000000e+00 : f32
    %232 = arith.select %230, %231, %cst_72 : f32
    %233 = vector.broadcast %232 : f32 to vector<16x16xf32>
    %234 = arith.mulf %225, %233 : vector<16x16xf32>
    %cst_73 = arith.constant 0.000000e+00 : f32
    %cst_74 = arith.constant 1.000000e+00 : f32
    %235 = vector.broadcast %cst_73 : f32 to vector<16x16xf32>
    %236 = arith.maximumf %235, %234 : vector<16x16xf32>
    %237 = vector.broadcast %cst_74 : f32 to vector<16x16xf32>
    %238 = arith.minimumf %237, %236 : vector<16x16xf32>
    %239 = arith.mulf %238, %224 : vector<16x16xf32>
    %240 = vector.shape_cast %239 : vector<16x16xf32> to vector<1x16x16xf32>
    %cst_75 = arith.constant dense<0.000000e+00> : vector<1xf32>
    %241 = vector.multi_reduction <add>, %240, %cst_75 [1, 2] : vector<1x16x16xf32> to vector<1xf32>
    %242 = vector.shape_cast %241 : vector<1xf32> to vector<1x1x1xf32>
    %243 = vector.extract %242[0, 0, 0] : f32 from vector<1x1x1xf32>
    %244 = arith.addf %211, %243 : f32
    %245 = vector.extract_strided_slice %12 {offsets = [112, 0], sizes = [16, 32], strides = [1, 1]} : vector<128x32xf32> to vector<16x32xf32>
    %cst_76 = arith.constant dense<0.000000e+00> : vector<32x32xf32>
    %246 = tpu.matmul %13, %245, %cst_76 {dimension_numbers = #tpu.dot_dimension_numbers<[1], [0], [0], [1], [0, 0, 1, 1], [], []>} : vector<32x16xf32>, vector<16x32xf32>, vector<32x32xf32> -> vector<32x32xf32>
    %247 = vector.extract_strided_slice %246 {offsets = [0, 0], sizes = [16, 16], strides = [1, 1]} : vector<32x32xf32> to vector<16x16xf32>
    %248 = vector.extract_strided_slice %246 {offsets = [0, 16], sizes = [16, 16], strides = [1, 1]} : vector<32x32xf32> to vector<16x16xf32>
    %249 = vector.extract_strided_slice %246 {offsets = [16, 0], sizes = [16, 16], strides = [1, 1]} : vector<32x32xf32> to vector<16x16xf32>
    %250 = vector.extract_strided_slice %246 {offsets = [16, 16], sizes = [16, 16], strides = [1, 1]} : vector<32x32xf32> to vector<16x16xf32>
    %251 = arith.subf %247, %250 : vector<16x16xf32>
    %252 = arith.addf %248, %249 : vector<16x16xf32>
    %cst_77 = arith.constant 0.000000e+00 : f32
    %253 = vector.broadcast %cst_77 : f32 to vector<16x16xf32>
    %254 = arith.subf %253, %252 : vector<16x16xf32>
    %255 = arith.mulf %251, %251 : vector<16x16xf32>
    %256 = arith.mulf %254, %254 : vector<16x16xf32>
    %257 = arith.addf %255, %256 : vector<16x16xf32>
    %258 = math.sqrt %257 : vector<16x16xf32>
    %259 = vector.shape_cast %258 : vector<16x16xf32> to vector<1x16x16xf32>
    %cst_78 = arith.constant dense<0xFF800000> : vector<1xf32>
    %260 = vector.multi_reduction <maximumf>, %259, %cst_78 [1, 2] : vector<1x16x16xf32> to vector<1xf32>
    %261 = vector.shape_cast %260 : vector<1xf32> to vector<1x1x1xf32>
    %262 = vector.extract %261[0, 0, 0] : f32 from vector<1x1x1xf32>
    %cst_79 = arith.constant 0.000000e+00 : f32
    %263 = arith.cmpf ogt, %262, %cst_79 : f32
    %cst_80 = arith.constant 1.000000e+00 : f32
    %264 = arith.divf %cst_80, %262 : f32
    %cst_81 = arith.constant 0.000000e+00 : f32
    %265 = arith.select %263, %264, %cst_81 : f32
    %266 = vector.broadcast %265 : f32 to vector<16x16xf32>
    %267 = arith.mulf %258, %266 : vector<16x16xf32>
    %cst_82 = arith.constant 0.000000e+00 : f32
    %cst_83 = arith.constant 1.000000e+00 : f32
    %268 = vector.broadcast %cst_82 : f32 to vector<16x16xf32>
    %269 = arith.maximumf %268, %267 : vector<16x16xf32>
    %270 = vector.broadcast %cst_83 : f32 to vector<16x16xf32>
    %271 = arith.minimumf %270, %269 : vector<16x16xf32>
    %272 = arith.mulf %271, %257 : vector<16x16xf32>
    %273 = vector.shape_cast %272 : vector<16x16xf32> to vector<1x16x16xf32>
    %cst_84 = arith.constant dense<0.000000e+00> : vector<1xf32>
    %274 = vector.multi_reduction <add>, %273, %cst_84 [1, 2] : vector<1x16x16xf32> to vector<1xf32>
    %275 = vector.shape_cast %274 : vector<1xf32> to vector<1x1x1xf32>
    %276 = vector.extract %275[0, 0, 0] : f32 from vector<1x1x1xf32>
    %277 = arith.addf %244, %276 : f32
    %c0_85 = arith.constant 0 : index
    %c0_86 = arith.constant 0 : index
    %278 = vector.load %arg7[%c0_85, %c0_86] : memref<1x1xf32, #tpu.memory_space<vmem>>, vector<1x1xf32>
    %279 = vector.broadcast %277 : f32 to vector<1x1xf32>
    %280 = arith.addf %278, %279 : vector<1x1xf32>
    %c0_87 = arith.constant 0 : index
    %c0_88 = arith.constant 0 : index
    %281 = vector.load %arg7[%c0_87, %c0_88] : memref<1x1xf32, #tpu.memory_space<vmem>>, vector<1x1xf32>
    tpu.vector_store %arg7[%c0_87, %c0_88], %280 {strides = array<i32>} : memref<1x1xf32, #tpu.memory_space<vmem>>, vector<1x1xf32>,
    return
  }
  func.func @transform_0(%arg0: i32, %arg1: i32, %arg2: i32) -> (i32, i32) {
    %c0_i32 = arith.constant 0 : i32
    %c0_i32_0 = arith.constant 0 : i32
    %c0_i32_1 = arith.constant 0 : i32
    return %c0_i32, %c0_i32_0 : i32, i32
  }
  func.func @transform_1(%arg0: i32, %arg1: i32, %arg2: i32) -> (i32, i32) {
    %c0_i32 = arith.constant 0 : i32
    %c0_i32_0 = arith.constant 0 : i32
    %c0_i32_1 = arith.constant 0 : i32
    return %c0_i32, %c0_i32_0 : i32, i32
  }
  func.func @transform_2(%arg0: i32, %arg1: i32, %arg2: i32) -> (i32, i32, i32) {
    %c0_i32 = arith.constant 0 : i32
    return %arg0, %arg1, %arg2 : i32, i32, i32
  }
  func.func @transform_3(%arg0: i32, %arg1: i32, %arg2: i32) -> (i32, i32, i32) {
    %c0_i32 = arith.constant 0 : i32
    return %arg0, %arg1, %arg2 : i32, i32, i32
  }
  func.func @transform_4(%arg0: i32, %arg1: i32, %arg2: i32) -> (i32, i32) {
    %c0_i32 = arith.constant 0 : i32
    %c0_i32_0 = arith.constant 0 : i32
    %c0_i32_1 = arith.constant 0 : i32
    return %c0_i32, %c0_i32_0 : i32, i32
  }
}

</mosaic_0001>

<llo_original>
// kernel: tpu_custom_call.1
$region0: #{tpu_custom_call.1}
  #allocation0 [shape = 'u32[]', space=smem, size = 0x4, offset = 0x4, fixed_abs, tag = 'smem constant byte address 0x4 - core index']
  #allocation1 [shape = 'u32[144,128]{1,0:T(1,128)}', space=vmem, size = 0x12000, scoped, tag = 'internal scratch']
  %s0 = inlined_call_operand.vmem [shape: f32[16,32], index: 0, kind: input, shape index: {}]
  %s1 = inlined_call_operand.vmem [shape: f32[32,16], index: 1, kind: input, shape index: {}]
  %s2 = inlined_call_operand.hbm [shape: f32[8,16,16], index: 2, kind: input, shape index: {}]
  %s3 = inlined_call_operand.hbm [shape: f32[8,16,16], index: 3, kind: input, shape index: {}]
  %s4 = inlined_call_operand.hbm [shape: f32[1,1], index: 4, kind: output, shape index: {}]
  %s5 = sld [smem:[#allocation0]]
  $region38: #{tpu_custom_call.1} parent=0
    _
  %s7 = ssub.s32 1, %s5
  %s8 = scalar_select 0, %s7, %s5
  $region1: #{tpu_custom_call.1} parent=0
    #allocation2 [shape = 'u8[65536]{0}', space=vmem, size = 0x10000, scoped, tag = 'input window, operand 2, single buffered']
    #allocation3 [shape = 's32[1]{0}', space=sflag, size = 0x4, scoped, tag = 'scoped memory for tpu_custom_call.1']
    #allocation4 [shape = 's32[1]{0}', space=sflag, size = 0x4, scoped, tag = 'scoped memory for tpu_custom_call.1']
    #allocation5 [shape = 'u8[65536]{0}', space=vmem, size = 0x10000, scoped, tag = 'input window, operand 3, single buffered']
    #allocation6 [shape = 's32[1]{0}', space=sflag, size = 0x4, scoped, tag = 'scoped memory for tpu_custom_call.1']
    #allocation7 [shape = 'u8[512]{0}', space=vmem, size = 0x400, scoped, tag = 'output window, operand 0, single buffered']
    %9 = vsyncpa [#allocation3], 0
    %10 = vsyncpa [#allocation6], 0
    %11 = vsyncpa [#allocation4], 0
    // Predicated region
    $region2: #{tpu_custom_call.1} parent=1 // pred_check
      _
    $region3: #{tpu_custom_call.1} parent=1 // pred_check_branch
      %13 = sbr.rel (0) target = $region5
    $region4: #{tpu_custom_call.1} parent=1 // pred_region
      _
    $region5: #{tpu_custom_call.1} parent=1 // pred_fallthru
      _
    // Predicated region
    $region6: #{tpu_custom_call.1} parent=1 // pred_check
      _
    $region7: #{tpu_custom_call.1} parent=1 // pred_check_branch
      %15 = sbr.rel (0) target = $region9
    $region8: #{tpu_custom_call.1} parent=1 // pred_region
      _
    $region9: #{tpu_custom_call.1} parent=1 // pred_fallthru
      _
    // Predicated region
    $region10: #{tpu_custom_call.1} parent=1 // pred_check
      _
    $region11: #{tpu_custom_call.1} parent=1 // pred_check_branch
      %17 = sbr.rel (0) target = $region13
    $region12: #{tpu_custom_call.1} parent=1 // pred_region
      %s19 = ssub.s32 2048, 2048
      %20 = vsyncadd [#allocation3], %s19
      %s21 = sshll.u32 [#allocation2], 4
      %s22 = int_to_ptr.vmem [resolvable:$true] %s21
      %27 = dma.hbm_to_vmem [thread:$0]  %s2, 2048, %s22, [#allocation3], 128, 128, 8
    $region13: #{tpu_custom_call.1} parent=1 // pred_fallthru
      _
    // Predicated region
    $region14: #{tpu_custom_call.1} parent=1 // pred_check
      _
    $region15: #{tpu_custom_call.1} parent=1 // pred_check_branch
      %29 = sbr.rel (0) target = $region17
    $region16: #{tpu_custom_call.1} parent=1 // pred_region
      %s31 = ssub.s32 2048, 2048
      %32 = vsyncadd [#allocation6], %s31
      %s33 = sshll.u32 [#allocation5], 4
      %s34 = int_to_ptr.vmem [resolvable:$true] %s33
      %39 = dma.hbm_to_vmem [thread:$0]  %s3, 2048, %s34, [#allocation6], 128, 128, 8
    $region17: #{tpu_custom_call.1} parent=1 // pred_fallthru
      _
    // Predicated region
    $region18: #{tpu_custom_call.1} parent=1 // pred_check
      _
    $region19: #{tpu_custom_call.1} parent=1 // pred_check_branch
      %41 = sbr.rel (0) target = $region21
    $region20: #{tpu_custom_call.1} parent=1 // pred_region
      %42 = dma.done [#allocation3], 2048
    $region21: #{tpu_custom_call.1} parent=1 // pred_fallthru
      _
    // Predicated region
    $region22: #{tpu_custom_call.1} parent=1 // pred_check
      _
    $region23: #{tpu_custom_call.1} parent=1 // pred_check_branch
      %44 = sbr.rel (0) target = $region25
    $region24: #{tpu_custom_call.1} parent=1 // pred_region
      %45 = dma.done [#allocation6], 2048
    $region25: #{tpu_custom_call.1} parent=1 // pred_fallthru
      _
    %p46 = scmp.eq.s32.totalorder 0, 0
    %p47 = scmp.eq.s32.totalorder 0, 0
    %p48 = pnand %p46, %p47
    %p49 = pneg %p48
    %p50 = scmp.eq.s32.totalorder 0, 0
    %p51 = pnand %p49, %p50
    %p52 = pneg %p51
    // Predicated region
    $region26: #{tpu_custom_call.1} parent=1 // pred_check
      _
    $region27: #{tpu_custom_call.1} parent=1 // pred_check_branch
      %54 = sbr.rel (%p51) target = $region29
    $region28: #{tpu_custom_call.1} parent=1 // pred_region
      %vm55 = vcmask 0
      %56 = vst.msk [vmem:[#allocation7] sm:$0x1] %vm55, 0.0
    $region29: #{tpu_custom_call.1} parent=1 // pred_fallthru
      _
    %v57 = vld [vmem:[#allocation2] sm:$0xff]
    %v58 = vld [vmem:[#allocation2 + $0x8] sm:$0xff]
    %v59 = vld [vmem:[#allocation2 + $0x10] sm:$0xff]
    %v60 = vld [vmem:[#allocation2 + $0x18] sm:$0xff]
    %v61 = vld [vmem:[#allocation2 + $0x20] sm:$0xff]
    %v62 = vld [vmem:[#allocation2 + $0x28] sm:$0xff]
    %v63 = vld [vmem:[#allocation2 + $0x30] sm:$0xff]
    %v64 = vld [vmem:[#allocation2 + $0x38] sm:$0xff]
    %v65 = vld [vmem:[#allocation2 + $0x40] sm:$0xff]
    %v66 = vld [vmem:[#allocation2 + $0x48] sm:$0xff]
    %v67 = vld [vmem:[#allocation2 + $0x50] sm:$0xff]
    %v68 = vld [vmem:[#allocation2 + $0x58] sm:$0xff]
    %v69 = vld [vmem:[#allocation2 + $0x60] sm:$0xff]
    %v70 = vld [vmem:[#allocation2 + $0x68] sm:$0xff]
    %v71 = vld [vmem:[#allocation2 + $0x70] sm:$0xff]
    %v72 = vld [vmem:[#allocation2 + $0x78] sm:$0xff]
    %v73 = vld [vmem:[#allocation5] sm:$0xff]
    %v74 = vld [vmem:[#allocation5 + $0x8] sm:$0xff]
    %v75 = vld [vmem:[#allocation5 + $0x10] sm:$0xff]
    %v76 = vld [vmem:[#allocation5 + $0x18] sm:$0xff]
    %v77 = vld [vmem:[#allocation5 + $0x20] sm:$0xff]
    %v78 = vld [vmem:[#allocation5 + $0x28] sm:$0xff]
    %v79 = vld [vmem:[#allocation5 + $0x30] sm:$0xff]
    %v80 = vld [vmem:[#allocation5 + $0x38] sm:$0xff]
    %v81 = vld [vmem:[#allocation5 + $0x40] sm:$0xff]
    %v82 = vld [vmem:[#allocation5 + $0x48] sm:$0xff]
    %v83 = vld [vmem:[#allocation5 + $0x50] sm:$0xff]
    %v84 = vld [vmem:[#allocation5 + $0x58] sm:$0xff]
    %v85 = vld [vmem:[#allocation5 + $0x60] sm:$0xff]
    %v86 = vld [vmem:[#allocation5 + $0x68] sm:$0xff]
    %v87 = vld [vmem:[#allocation5 + $0x70] sm:$0xff]
    %v88 = vld [vmem:[#allocation5 + $0x78] sm:$0xff]
    %v89 = vsub.f32 %v57, %v73
    %v90 = vsub.f32 %v58, %v74
    %v91 = vsub.f32 %v59, %v75
    %v92 = vsub.f32 %v60, %v76
    %v93 = vsub.f32 %v61, %v77
    %v94 = vsub.f32 %v62, %v78
    %v95 = vsub.f32 %v63, %v79
    %v96 = vsub.f32 %v64, %v80
    %v97 = vsub.f32 %v65, %v81
    %v98 = vsub.f32 %v66, %v82
    %v99 = vsub.f32 %v67, %v83
    %v100 = vsub.f32 %v68, %v84
    %v101 = vsub.f32 %v69, %v85
    %v102 = vsub.f32 %v70, %v86
    %v103 = vsub.f32 %v71, %v87
    %v104 = vsub.f32 %v72, %v88
    %v105 = vld [vmem:[%s0] sm:$0xff]
    %v106 = vld [vmem:[%s0 + $0x8] sm:$0xff]
    %vm107 = vcmask 130048
    %v109 = vsel %vm107, %v89, 0
    %v112 = vsel %vm107, %v90, 0
    %v115 = vsel %vm107, %v91, 0
    %v118 = vsel %vm107, %v92, 0
    %v121 = vsel %vm107, %v93, 0
    %v124 = vsel %vm107, %v94, 0
    %v127 = vsel %vm107, %v95, 0
    %v130 = vsel %vm107, %v96, 0
    %v133 = vsel %vm107, %v97, 0
    %v136 = vsel %vm107, %v98, 0
    %v139 = vsel %vm107, %v99, 0
    %v142 = vsel %vm107, %v100, 0
    %v145 = vsel %vm107, %v101, 0
    %v148 = vsel %vm107, %v102, 0
    %v151 = vsel %vm107, %v103, 0
    %v154 = vsel %vm107, %v104, 0
    %156 = vmatprep.subr.mxu0 0.0
    %157 = vmatpush1.msra.mxu0 %v105
    %158 = vmatprep.subr.mxu0 0.0
    %159 = vmatpush1.msra.mxu0 %v106
    %160 = vmatprep.subr.mxu0 0.0
    %161 = vmatpush1.msra.mxu0 0.0
    %162 = vmatprep.subr.mxu0 0.0
    %163 = vmatpush1.msra.mxu0 0.0
    %164 = vmatprep.subr.mxu0 0.0
    %165 = vmatpush1.msra.mxu0 0.0
    %166 = vmatprep.subr.mxu0 0.0
    %167 = vmatpush1.msra.mxu0 0.0
    %168 = vmatprep.subr.mxu0 0.0
    %169 = vmatpush1.msra.mxu0 0.0
    %170 = vmatprep.subr.mxu0 0.0
    %171 = vmatpush1.msra.mxu0 0.0
    %172 = vmatprep.subr.mxu0 0.0
    %173 = vmatpush1.msra.mxu0 0.0
    %174 = vmatprep.subr.mxu0 0.0
    %175 = vmatpush1.msra.mxu0 0.0
    %176 = vmatprep.subr.mxu0 0.0
    %177 = vmatpush1.msra.mxu0 0.0
    %178 = vmatprep.subr.mxu0 0.0
    %179 = vmatpush1.msra.mxu0 0.0
    %180 = vmatprep.subr.mxu0 0.0
    %181 = vmatpush1.msra.mxu0 0.0
    %182 = vmatprep.subr.mxu0 0.0
    %183 = vmatpush1.msra.mxu0 0.0
    %184 = vmatprep.subr.mxu0 0.0
    %185 = vmatpush1.msra.mxu0 0.0
    %186 = vmatprep.subr.mxu0 0.0
    %187 = vmatpush1.msra.mxu0 0.0
    %188 = vmatprep.subr.mxu0 0.0
    %189 = vmatpush1.msra.mxu0 0.0
    %190 = vmatprep.subr.mxu0 0.0
    %191 = vmatpush1.msra.mxu0 0.0
    %192 = vmatprep.subr.mxu0 0.0
    %193 = vmatpush1.msra.mxu0 0.0
    %194 = vmatprep.subr.mxu0 0.0
    %195 = vmatpush1.msra.mxu0 0.0
    %196 = vmatprep.subr.mxu0 0.0
    %197 = vmatpush1.msra.mxu0 0.0
    %198 = vmatprep.subr.mxu0 0.0
    %199 = vmatpush1.msra.mxu0 0.0
    %200 = vmatprep.subr.mxu0 0.0
    %201 = vmatpush1.msra.mxu0 0.0
    %202 = vmatprep.subr.mxu0 0.0
    %203 = vmatpush1.msra.mxu0 0.0
    %204 = vmatprep.subr.mxu0 0.0
    %205 = vmatpush1.msra.mxu0 0.0
    %206 = vmatprep.subr.mxu0 0.0
    %207 = vmatpush1.msra.mxu0 0.0
    %208 = vmatprep.subr.mxu0 0.0
    %209 = vmatpush1.msra.mxu0 0.0
    %210 = vmatprep.subr.mxu0 0.0
    %211 = vmatpush1.msra.mxu0 0.0
    %212 = vmatprep.subr.mxu0 0.0
    %213 = vmatpush1.msra.mxu0 0.0
    %214 = vmatprep.subr.mxu0 0.0
    %215 = vmatpush1.msra.mxu0 0.0
    %216 = vmatprep.subr.mxu0 0.0
    %217 = vmatpush1.msra.mxu0 0.0
    %218 = vmatprep.subr.mxu0 0.0
    %219 = vmatpush1.msra.mxu0 0.0
    %220 = vmatprep.mubr.f32.mxu0 0.0
    %221 = vmatmul.mubr.f32.gmra.mrb[0].mxu0 %v109
    %v222 = vpop.f32.mrb[0].mxu0
    %v223 = vadd.f32 0.0, %v222
    %v224 = vpop.f32.mrb[0].mxu0
    %225 = vmatprep.mubr.f32.mxu0 0.0
    %226 = vmatmul.mubr.f32.gmra.mrb[0].mxu0 %v112
    %v227 = vpop.f32.mrb[0].mxu0
    %v228 = vadd.f32 0.0, %v227
    %v229 = vpop.f32.mrb[0].mxu0
    %230 = vmatprep.mubr.f32.mxu0 0.0
    %231 = vmatmul.mubr.f32.gmra.mrb[0].mxu0 %v115
    %v232 = vpop.f32.mrb[0].mxu0
    %v233 = vadd.f32 0.0, %v232
    %v234 = vpop.f32.mrb[0].mxu0
    %235 = vmatprep.mubr.f32.mxu0 0.0
    %236 = vmatmul.mubr.f32.gmra.mrb[0].mxu0 %v118
    %v237 = vpop.f32.mrb[0].mxu0
    %v238 = vadd.f32 0.0, %v237
    %v239 = vpop.f32.mrb[0].mxu0
    %240 = vmatprep.mubr.f32.mxu0 0.0
    %241 = vmatmul.mubr.f32.gmra.mrb[0].mxu0 %v121
    %v242 = vpop.f32.mrb[0].mxu0
    %v243 = vadd.f32 0.0, %v242
    %v244 = vpop.f32.mrb[0].mxu0
    %245 = vmatprep.mubr.f32.mxu0 0.0
    %246 = vmatmul.mubr.f32.gmra.mrb[0].mxu0 %v124
    %v247 = vpop.f32.mrb[0].mxu0
    %v248 = vadd.f32 0.0, %v247
    %v249 = vpop.f32.mrb[0].mxu0
    %250 = vmatprep.mubr.f32.mxu0 0.0
    %251 = vmatmul.mubr.f32.gmra.mrb[0].mxu0 %v127
    %v252 = vpop.f32.mrb[0].mxu0
    %v253 = vadd.f32 0.0, %v252
    %v254 = vpop.f32.mrb[0].mxu0
    %255 = vmatprep.mubr.f32.mxu0 0.0
    %256 = vmatmul.mubr.f32.gmra.mrb[0].mxu0 %v130
    %v257 = vpop.f32.mrb[0].mxu0
    %v258 = vadd.f32 0.0, %v257
    %v259 = vpop.f32.mrb[0].mxu0
    %260 = vmatprep.mubr.f32.mxu0 0.0
    %261 = vmatmul.mubr.f32.gmra.mrb[0].mxu0 %v133
    %v262 = vpop.f32.mrb[0].mxu0
    %v263 = vadd.f32 0.0, %v262
    %v264 = vpop.f32.mrb[0].mxu0
    %265 = vmatprep.mubr.f32.mxu0 0.0
    %266 = vmatmul.mubr.f32.gmra.mrb[0].mxu0 %v136
    %v267 = vpop.f32.mrb[0].mxu0
    %v268 = vadd.f32 0.0, %v267
    %v269 = vpop.f32.mrb[0].mxu0
    %270 = vmatprep.mubr.f32.mxu0 0.0
    %271 = vmatmul.mubr.f32.gmra.mrb[0].mxu0 %v139
    %v272 = vpop.f32.mrb[0].mxu0
    %v273 = vadd.f32 0.0, %v272
    %v274 = vpop.f32.mrb[0].mxu0
    %275 = vmatprep.mubr.f32.mxu0 0.0
    %276 = vmatmul.mubr.f32.gmra.mrb[0].mxu0 %v142
    %v277 = vpop.f32.mrb[0].mxu0
    %v278 = vadd.f32 0.0, %v277
    %v279 = vpop.f32.mrb[0].mxu0
    %280 = vmatprep.mubr.f32.mxu0 0.0
    %281 = vmatmul.mubr.f32.gmra.mrb[0].mxu0 %v145
    %v282 = vpop.f32.mrb[0].mxu0
    %v283 = vadd.f32 0.0, %v282
    %v284 = vpop.f32.mrb[0].mxu0
    %285 = vmatprep.mubr.f32.mxu0 0.0
    %286 = vmatmul.mubr.f32.gmra.mrb[0].mxu0 %v148
    %v287 = vpop.f32.mrb[0].mxu0
    %v288 = vadd.f32 0.0, %v287
    %v289 = vpop.f32.mrb[0].mxu0
    %290 = vmatprep.mubr.f32.mxu0 0.0
    %291 = vmatmul.mubr.f32.gmra.mrb[0].mxu0 %v151
    %v292 = vpop.f32.mrb[0].mxu0
    %v293 = vadd.f32 0.0, %v292
    %v294 = vpop.f32.mrb[0].mxu0
    %295 = vmatprep.mubr.f32.mxu0 0.0
    %296 = vmatmul.mubr.f32.gmra.mrb[0].mxu0 %v154
    %v297 = vpop.f32.mrb[0].mxu0
    %v298 = vadd.f32 0.0, %v297
    %v299 = vpop.f32.mrb[0].mxu0
    %300 = vdwg.mxu0
    %v301 = vld [vmem:[%s1] sm:$0xff]
    %v302 = vld [vmem:[%s1 + $0x8] sm:$0xff]
    %v303 = vld [vmem:[%s1 + $0x10] sm:$0xff]
    %v304 = vld [vmem:[%s1 + $0x18] sm:$0xff]
    %v306 = vsel %vm107, %v301, 0
    %v309 = vsel %vm107, %v302, 0
    %v312 = vsel %vm107, %v303, 0
    %v315 = vsel %vm107, %v304, 0
    %317 = vmatprep.subr.mxu0 0.0
    %318 = vmatpush1.msra.mxu0 %v223
    %319 = vmatprep.subr.mxu0 0.0
    %320 = vmatpush1.msra.mxu0 %v228
    %321 = vmatprep.subr.mxu0 0.0
    %322 = vmatpush1.msra.mxu0 0.0
    %323 = vmatprep.subr.mxu0 0.0
    %324 = vmatpush1.msra.mxu0 0.0
    %325 = vmatprep.subr.mxu0 0.0
    %326 = vmatpush1.msra.mxu0 0.0
    %327 = vmatprep.subr.mxu0 0.0
    %328 = vmatpush1.msra.mxu0 0.0
    %329 = vmatprep.subr.mxu0 0.0
    %330 = vmatpush1.msra.mxu0 0.0
    %331 = vmatprep.subr.mxu0 0.0
    %332 = vmatpush1.msra.mxu0 0.0
    %333 = vmatprep.subr.mxu0 0.0
    %334 = vmatpush1.msra.mxu0 0.0
    %335 = vmatprep.subr.mxu0 0.0
    %336 = vmatpush1.msra.mxu0 0.0
    %337 = vmatprep.subr.mxu0 0.0
    %338 = vmatpush1.msra.mxu0 0.0
    %339 = vmatprep.subr.mxu0 0.0
    %340 = vmatpush1.msra.mxu0 0.0
    %341 = vmatprep.subr.mxu0 0.0
    %342 = vmatpush1.msra.mxu0 0.0
    %343 = vmatprep.subr.mxu0 0.0
    %344 = vmatpush1.msra.mxu0 0.0
    %345 = vmatprep.subr.mxu0 0.0
    %346 = vmatpush1.msra.mxu0 0.0
    %347 = vmatprep.subr.mxu0 0.0
    %348 = vmatpush1.msra.mxu0 0.0
    %349 = vmatprep.subr.mxu0 0.0
    %350 = vmatpush1.msra.mxu0 0.0
    %351 = vmatprep.subr.mxu0 0.0
    %352 = vmatpush1.msra.mxu0 0.0
    %353 = vmatprep.subr.mxu0 0.0
    %354 = vmatpush1.msra.mxu0 0.0
    %355 = vmatprep.subr.mxu0 0.0
    %356 = vmatpush1.msra.mxu0 0.0
    %357 = vmatprep.subr.mxu0 0.0
    %358 = vmatpush1.msra.mxu0 0.0
    %359 = vmatprep.subr.mxu0 0.0
    %360 = vmatpush1.msra.mxu0 0.0
    %361 = vmatprep.subr.mxu0 0.0
    %362 = vmatpush1.msra.mxu0 0.0
    %363 = vmatprep.subr.mxu0 0.0
    %364 = vmatpush1.msra.mxu0 0.0
    %365 = vmatprep.subr.mxu0 0.0
    %366 = vmatpush1.msra.mxu0 0.0
    %367 = vmatprep.subr.mxu0 0.0
    %368 = vmatpush1.msra.mxu0 0.0
    %369 = vmatprep.subr.mxu0 0.0
    %370 = vmatpush1.msra.mxu0 0.0
    %371 = vmatprep.subr.mxu0 0.0
    %372 = vmatpush1.msra.mxu0 0.0
    %373 = vmatprep.subr.mxu0 0.0
    %374 = vmatpush1.msra.mxu0 0.0
    %375 = vmatprep.subr.mxu0 0.0
    %376 = vmatpush1.msra.mxu0 0.0
    %377 = vmatprep.subr.mxu0 0.0
    %378 = vmatpush1.msra.mxu0 0.0
    %379 = vmatprep.subr.mxu0 0.0
    %380 = vmatpush1.msra.mxu0 0.0
    %381 = vmatprep.mubr.f32.mxu0 0.0
    %382 = vmatmul.mubr.f32.gmra.mrb[0].mxu0 %v306
    %v383 = vpop.f32.mrb[0].mxu0
    %v384 = vadd.f32 0.0, %v383
    %v385 = vpop.f32.mrb[0].mxu0
    %386 = vmatprep.mubr.f32.mxu0 0.0
    %387 = vmatmul.mubr.f32.gmra.mrb[0].mxu0 %v309
    %v388 = vpop.f32.mrb[0].mxu0
    %v389 = vadd.f32 0.0, %v388
    %v390 = vpop.f32.mrb[0].mxu0
    %391 = vmatprep.mubr.f32.mxu0 0.0
    %392 = vmatmul.mubr.f32.gmra.mrb[0].mxu0 %v312
    %v393 = vpop.f32.mrb[0].mxu0
    %v394 = vadd.f32 0.0, %v393
    %v395 = vpop.f32.mrb[0].mxu0
    %396 = vmatprep.mubr.f32.mxu0 0.0
    %397 = vmatmul.mubr.f32.gmra.mrb[0].mxu0 %v315
    %v398 = vpop.f32.mrb[0].mxu0
    %v399 = vadd.f32 0.0, %v398
    %v400 = vpop.f32.mrb[0].mxu0
    %401 = vdwg.mxu0
    %404 = vrot.lane.b32.xlu0 %v394, 112
    %v405 = vpop.permute.xlu0 %404
    %406 = vrot.lane.b32.xlu0 %v399, 112
    %v407 = vpop.permute.xlu0 %406
    %v410 = vsub.f32 %v384, %v405
    %v411 = vsub.f32 %v389, %v407
    %412 = vrot.lane.b32.xlu0 %v394, 16
    %v413 = vpop.permute.xlu0 %412
    %414 = vrot.lane.b32.xlu0 %v399, 16
    %v415 = vpop.permute.xlu0 %414
    %v418 = vadd.f32 %v384, %v413
    %v419 = vadd.f32 %v389, %v415
    %v420 = vsub.f32 0.0, %v418
    %v421 = vsub.f32 0.0, %v419
    %v422 = vmul.f32 %v410, %v410
    %v423 = vmul.f32 %v411, %v411
    %v424 = vmul.f32 %v420, %v420
    %v425 = vmul.f32 %v421, %v421
    %428 = vrot.lane.b32.xlu0 %v424, 112
    %v429 = vpop.permute.xlu0 %428
    %430 = vrot.lane.b32.xlu0 %v425, 112
    %v431 = vpop.permute.xlu0 %430
    %v434 = vadd.f32 %v422, %v429
    %v435 = vadd.f32 %v423, %v431
    %v436 = vrsqrt.pop %v434
    %v437 = vmul.f32 %v434, %v436
    %vm438 = vcmp.eq.f32.partialorder %v434, inf
    %v439 = vsel %vm438, %v434, %v437
    %vm440 = vcmp.eq.f32.partialorder %v434, 0.0
    %v441 = vand.u32 %v434, 2147483648
    %v442 = vsel %vm440, %v441, %v439
    %v443 = vrsqrt.pop %v435
    %v444 = vmul.f32 %v435, %v443
    %vm445 = vcmp.eq.f32.partialorder %v435, inf
    %v446 = vsel %vm445, %v435, %v444
    %vm447 = vcmp.eq.f32.partialorder %v435, 0.0
    %v448 = vand.u32 %v435, 2147483648
    %v449 = vsel %vm447, %v448, %v446
    %v450 = vsel %vm107, %v442, -inf
    %v451 = vsel %vm107, %v449, -inf
    %v452 = vmax.f32 %v450, %v451
    %453 = vmax.xlane.f32.xlu0 %v452
    %v454 = vpop.xlane.xlu0 %453
    %v455 = vrot.slane %v454, 4
    %v456 = vmax.f32 %v454, %v455
    %v457 = vrot.slane %v456, 2
    %v458 = vmax.f32 %v456, %v457
    %v459 = vrot.slane %v458, 1
    %v460 = vmax.f32 %v458, %v459
    %s461 = vtos %v460
    %p462 = scmp.gt.f32.partialorder %s461, 0.0
    %v463 = vstv %s461
    %v464 = vrcp.pop %v463
    %s465 = vtos %v464
    %s466 = scalar_select %p462, %s465, 0.0
    %v467 = vstv %s466
    %v468 = vmul.f32 %v442, %v467
    %v469 = vmul.f32 %v449, %v467
    %v470 = vmax.f32 %v468, 0.0
    %v471 = vmax.f32 %v469, 0.0
    %v472 = vmin.f32 %v470, 1.0
    %v473 = vmin.f32 %v471, 1.0
    %v474 = vmul.f32 %v472, %v434
    %v475 = vmul.f32 %v473, %v435
    %v476 = vsel %vm107, %v474, 0.0
    %v477 = vsel %vm107, %v475, 0.0
    %v478 = vadd.f32 %v476, %v477
    %479 = vadd.xlane.f32.xlu0 %v478
    %v480 = vpop.xlane.xlu0 %479
    %v481 = vrot.slane %v480, 4
    %v482 = vadd.f32 %v480, %v481
    %v483 = vrot.slane %v482, 2
    %v484 = vadd.f32 %v482, %v483
    %v485 = vrot.slane %v484, 1
    %v486 = vadd.f32 %v484, %v485
    %s487 = vtos %v486
    %s488 = sadd.f32 %s487, 0.0
    %489 = vmatprep.subr.mxu0 0.0
    %490 = vmatpush1.msra.mxu0 %v233
    %491 = vmatprep.subr.mxu0 0.0
    %492 = vmatpush1.msra.mxu0 %v238
    %493 = vmatprep.subr.mxu0 0.0
    %494 = vmatpush1.msra.mxu0 0.0
    %495 = vmatprep.subr.mxu0 0.0
    %496 = vmatpush1.msra.mxu0 0.0
    %497 = vmatprep.subr.mxu0 0.0
    %498 = vmatpush1.msra.mxu0 0.0
    %499 = vmatprep.subr.mxu0 0.0
    %500 = vmatpush1.msra.mxu0 0.0
    %501 = vmatprep.subr.mxu0 0.0
    %502 = vmatpush1.msra.mxu0 0.0
    %503 = vmatprep.subr.mxu0 0.0
    %504 = vmatpush1.msra.mxu0 0.0
    %505 = vmatprep.subr.mxu0 0.0
    %506 = vmatpush1.msra.mxu0 0.0
    %507 = vmatprep.subr.mxu0 0.0
    %508 = vmatpush1.msra.mxu0 0.0
    %509 = vmatprep.subr.mxu0 0.0
    %510 = vmatpush1.msra.mxu0 0.0
    %511 = vmatprep.subr.mxu0 0.0
    %512 = vmatpush1.msra.mxu0 0.0
    %513 = vmatprep.subr.mxu0 0.0
    %514 = vmatpush1.msra.mxu0 0.0
    %515 = vmatprep.subr.mxu0 0.0
    %516 = vmatpush1.msra.mxu0 0.0
    %517 = vmatprep.subr.mxu0 0.0
    %518 = vmatpush1.msra.mxu0 0.0
    %519 = vmatprep.subr.mxu0 0.0
    %520 = vmatpush1.msra.mxu0 0.0
    %521 = vmatprep.subr.mxu0 0.0
    %522 = vmatpush1.msra.mxu0 0.0
    %523 = vmatprep.subr.mxu0 0.0
    %524 = vmatpush1.msra.mxu0 0.0
    %525 = vmatprep.subr.mxu0 0.0
    %526 = vmatpush1.msra.mxu0 0.0
    %527 = vmatprep.subr.mxu0 0.0
    %528 = vmatpush1.msra.mxu0 0.0
    %529 = vmatprep.subr.mxu0 0.0
    %530 = vmatpush1.msra.mxu0 0.0
    %531 = vmatprep.subr.mxu0 0.0
    %532 = vmatpush1.msra.mxu0 0.0
    %533 = vmatprep.subr.mxu0 0.0
    %534 = vmatpush1.msra.mxu0 0.0
    %535 = vmatprep.subr.mxu0 0.0
    %536 = vmatpush1.msra.mxu0 0.0
    %537 = vmatprep.subr.mxu0 0.0
    %538 = vmatpush1.msra.mxu0 0.0
    %539 = vmatprep.subr.mxu0 0.0
    %540 = vmatpush1.msra.mxu0 0.0
    %541 = vmatprep.subr.mxu0 0.0
    %542 = vmatpush1.msra.mxu0 0.0
    %543 = vmatprep.subr.mxu0 0.0
    %544 = vmatpush1.msra.mxu0 0.0
    %545 = vmatprep.subr.mxu0 0.0
    %546 = vmatpush1.msra.mxu0 0.0
    %547 = vmatprep.subr.mxu0 0.0
    %548 = vmatpush1.msra.mxu0 0.0
    %549 = vmatprep.subr.mxu0 0.0
    %550 = vmatpush1.msra.mxu0 0.0
    %551 = vmatprep.subr.mxu0 0.0
    %552 = vmatpush1.msra.mxu0 0.0
    %553 = vmatprep.mubr.f32.mxu0 0.0
    %554 = vmatmul.mubr.f32.gmra.mrb[0].mxu0 %v306
    %v555 = vpop.f32.mrb[0].mxu0
    %v556 = vadd.f32 0.0, %v555
    %v557 = vpop.f32.mrb[0].mxu0
    %558 = vmatprep.mubr.f32.mxu0 0.0
    %559 = vmatmul.mubr.f32.gmra.mrb[0].mxu0 %v309
    %v560 = vpop.f32.mrb[0].mxu0
    %v561 = vadd.f32 0.0, %v560
    %v562 = vpop.f32.mrb[0].mxu0
    %563 = vmatprep.mubr.f32.mxu0 0.0
    %564 = vmatmul.mubr.f32.gmra.mrb[0].mxu0 %v312
    %v565 = vpop.f32.mrb[0].mxu0
    %v566 = vadd.f32 0.0, %v565
    %v567 = vpop.f32.mrb[0].mxu0
    %568 = vmatprep.mubr.f32.mxu0 0.0
    %569 = vmatmul.mubr.f32.gmra.mrb[0].mxu0 %v315
    %v570 = vpop.f32.mrb[0].mxu0
    %v571 = vadd.f32 0.0, %v570
    %v572 = vpop.f32.mrb[0].mxu0
    %573 = vdwg.mxu0
    %576 = vrot.lane.b32.xlu0 %v566, 112
    %v577 = vpop.permute.xlu0 %576
    %578 = vrot.lane.b32.xlu0 %v571, 112
    %v579 = vpop.permute.xlu0 %578
    %v582 = vsub.f32 %v556, %v577
    %v583 = vsub.f32 %v561, %v579
    %584 = vrot.lane.b32.xlu0 %v566, 16
    %v585 = vpop.permute.xlu0 %584
    %586 = vrot.lane.b32.xlu0 %v571, 16
    %v587 = vpop.permute.xlu0 %586
    %v590 = vadd.f32 %v556, %v585
    %v591 = vadd.f32 %v561, %v587
    %v592 = vsub.f32 0.0, %v590
    %v593 = vsub.f32 0.0, %v591
    %v594 = vmul.f32 %v582, %v582
    %v595 = vmul.f32 %v583, %v583
    %v596 = vmul.f32 %v592, %v592
    %v597 = vmul.f32 %v593, %v593
    %600 = vrot.lane.b32.xlu0 %v596, 112
    %v601 = vpop.permute.xlu0 %600
    %602 = vrot.lane.b32.xlu0 %v597, 112
    %v603 = vpop.permute.xlu0 %602
    %v606 = vadd.f32 %v594, %v601
    %v607 = vadd.f32 %v595, %v603
    %v608 = vrsqrt.pop %v606
    %v609 = vmul.f32 %v606, %v608
    %vm610 = vcmp.eq.f32.partialorder %v606, inf
    %v611 = vsel %vm610, %v606, %v609
    %vm612 = vcmp.eq.f32.partialorder %v606, 0.0
    %v613 = vand.u32 %v606, 2147483648
    %v614 = vsel %vm612, %v613, %v611
    %v615 = vrsqrt.pop %v607
    %v616 = vmul.f32 %v607, %v615
    %vm617 = vcmp.eq.f32.partialorder %v607, inf
    %v618 = vsel %vm617, %v607, %v616
    %vm619 = vcmp.eq.f32.partialorder %v607, 0.0
    %v620 = vand.u32 %v607, 2147483648
    %v621 = vsel %vm619, %v620, %v618
    %v622 = vsel %vm107, %v614, -inf
    %v623 = vsel %vm107, %v621, -inf
    %v624 = vmax.f32 %v622, %v623
    %625 = vmax.xlane.f32.xlu0 %v624
    %v626 = vpop.xlane.xlu0 %625
    %v627 = vrot.slane %v626, 4
    %v628 = vmax.f32 %v626, %v627
    %v629 = vrot.slane %v628, 2
    %v630 = vmax.f32 %v628, %v629
    %v631 = vrot.slane %v630, 1
    %v632 = vmax.f32 %v630, %v631
    %s633 = vtos %v632
    %p634 = scmp.gt.f32.partialorder %s633, 0.0
    %v635 = vstv %s633
    %v636 = vrcp.pop %v635
    %s637 = vtos %v636
    %s638 = scalar_select %p634, %s637, 0.0
    %v639 = vstv %s638
    %v640 = vmul.f32 %v614, %v639
    %v641 = vmul.f32 %v621, %v639
    %v642 = vmax.f32 %v640, 0.0
    %v643 = vmax.f32 %v641, 0.0
    %v644 = vmin.f32 %v642, 1.0
    %v645 = vmin.f32 %v643, 1.0
    %v646 = vmul.f32 %v644, %v606
    %v647 = vmul.f32 %v645, %v607
    %v648 = vsel %vm107, %v646, 0.0
    %v649 = vsel %vm107, %v647, 0.0
    %v650 = vadd.f32 %v648, %v649
    %651 = vadd.xlane.f32.xlu0 %v650
    %v652 = vpop.xlane.xlu0 %651
    %v653 = vrot.slane %v652, 4
    %v654 = vadd.f32 %v652, %v653
    %v655 = vrot.slane %v654, 2
    %v656 = vadd.f32 %v654, %v655
    %v657 = vrot.slane %v656, 1
    %v658 = vadd.f32 %v656, %v657
    %s659 = vtos %v658
    %s660 = sadd.f32 %s488, %s659
    %661 = vmatprep.subr.mxu0 0.0
    %662 = vmatpush1.msra.mxu0 %v243
    %663 = vmatprep.subr.mxu0 0.0
    %664 = vmatpush1.msra.mxu0 %v248
    %665 = vmatprep.subr.mxu0 0.0
    %666 = vmatpush1.msra.mxu0 0.0
    %667 = vmatprep.subr.mxu0 0.0
    %668 = vmatpush1.msra.mxu0 0.0
    %669 = vmatprep.subr.mxu0 0.0
    %670 = vmatpush1.msra.mxu0 0.0
    %671 = vmatprep.subr.mxu0 0.0
    %672 = vmatpush1.msra.mxu0 0.0
    %673 = vmatprep.subr.mxu0 0.0
    %674 = vmatpush1.msra.mxu0 0.0
    %675 = vmatprep.subr.mxu0 0.0
    %676 = vmatpush1.msra.mxu0 0.0
    %677 = vmatprep.subr.mxu0 0.0
    %678 = vmatpush1.msra.mxu0 0.0
    %679 = vmatprep.subr.mxu0 0.0
    %680 = vmatpush1.msra.mxu0 0.0
    %681 = vmatprep.subr.mxu0 0.0
    %682 = vmatpush1.msra.mxu0 0.0
    %683 = vmatprep.subr.mxu0 0.0
    %684 = vmatpush1.msra.mxu0 0.0
    %685 = vmatprep.subr.mxu0 0.0
    %686 = vmatpush1.msra.mxu0 0.0
    %687 = vmatprep.subr.mxu0 0.0
    %688 = vmatpush1.msra.mxu0 0.0
    %689 = vmatprep.subr.mxu0 0.0
    %690 = vmatpush1.msra.mxu0 0.0
    %691 = vmatprep.subr.mxu0 0.0
    %692 = vmatpush1.msra.mxu0 0.0
    %693 = vmatprep.subr.mxu0 0.0
    %694 = vmatpush1.msra.mxu0 0.0
    %695 = vmatprep.subr.mxu0 0.0
    %696 = vmatpush1.msra.mxu0 0.0
    %697 = vmatprep.subr.mxu0 0.0
    %698 = vmatpush1.msra.mxu0 0.0
    %699 = vmatprep.subr.mxu0 0.0
    %700 = vmatpush1.msra.mxu0 0.0
    %701 = vmatprep.subr.mxu0 0.0
    %702 = vmatpush1.msra.mxu0 0.0
    %703 = vmatprep.subr.mxu0 0.0
    %704 = vmatpush1.msra.mxu0 0.0
    %705 = vmatprep.subr.mxu0 0.0
    %706 = vmatpush1.msra.mxu0 0.0
    %707 = vmatprep.subr.mxu0 0.0
    %708 = vmatpush1.msra.mxu0 0.0
    %709 = vmatprep.subr.mxu0 0.0
    %710 = vmatpush1.msra.mxu0 0.0
    %711 = vmatprep.subr.mxu0 0.0
    %712 = vmatpush1.msra.mxu0 0.0
    %713 = vmatprep.subr.mxu0 0.0
    %714 = vmatpush1.msra.mxu0 0.0
    %715 = vmatprep.subr.mxu0 0.0
    %716 = vmatpush1.msra.mxu0 0.0
    %717 = vmatprep.subr.mxu0 0.0
    %718 = vmatpush1.msra.mxu0 0.0
    %719 = vmatprep.subr.mxu0 0.0
    %720 = vmatpush1.msra.mxu0 0.0
    %721 = vmatprep.subr.mxu0 0.0
    %722 = vmatpush1.msra.mxu0 0.0
    %723 = vmatprep.subr.mxu0 0.0
    %724 = vmatpush1.msra.mxu0 0.0
    %725 = vmatprep.mubr.f32.mxu0 0.0
    %726 = vmatmul.mubr.f32.gmra.mrb[0].mxu0 %v306
    %v727 = vpop.f32.mrb[0].mxu0
    %v728 = vadd.f32 0.0, %v727
    %v729 = vpop.f32.mrb[0].mxu0
    %730 = vmatprep.mubr.f32.mxu0 0.0
    %731 = vmatmul.mubr.f32.gmra.mrb[0].mxu0 %v309
    %v732 = vpop.f32.mrb[0].mxu0
    %v733 = vadd.f32 0.0, %v732
    %v734 = vpop.f32.mrb[0].mxu0
    %735 = vmatprep.mubr.f32.mxu0 0.0
    %736 = vmatmul.mubr.f32.gmra.mrb[0].mxu0 %v312
    %v737 = vpop.f32.mrb[0].mxu0
    %v738 = vadd.f32 0.0, %v737
    %v739 = vpop.f32.mrb[0].mxu0
    %740 = vmatprep.mubr.f32.mxu0 0.0
    %741 = vmatmul.mubr.f32.gmra.mrb[0].mxu0 %v315
    %v742 = vpop.f32.mrb[0].mxu0
    %v743 = vadd.f32 0.0, %v742
    %v744 = vpop.f32.mrb[0].mxu0
    %745 = vdwg.mxu0
    %748 = vrot.lane.b32.xlu0 %v738, 112
    %v749 = vpop.permute.xlu0 %748
    %750 = vrot.lane.b32.xlu0 %v743, 112
    %v751 = vpop.permute.xlu0 %750
    %v754 = vsub.f32 %v728, %v749
    %v755 = vsub.f32 %v733, %v751
    %756 = vrot.lane.b32.xlu0 %v738, 16
    %v757 = vpop.permute.xlu0 %756
    %758 = vrot.lane.b32.xlu0 %v743, 16
    %v759 = vpop.permute.xlu0 %758
    %v762 = vadd.f32 %v728, %v757
    %v763 = vadd.f32 %v733, %v759
    %v764 = vsub.f32 0.0, %v762
    %v765 = vsub.f32 0.0, %v763
    %v766 = vmul.f32 %v754, %v754
    %v767 = vmul.f32 %v755, %v755
    %v768 = vmul.f32 %v764, %v764
    %v769 = vmul.f32 %v765, %v765
    %772 = vrot.lane.b32.xlu0 %v768, 112
    %v773 = vpop.permute.xlu0 %772
    %774 = vrot.lane.b32.xlu0 %v769, 112
    %v775 = vpop.permute.xlu0 %774
    %v778 = vadd.f32 %v766, %v773
    %v779 = vadd.f32 %v767, %v775
    %v780 = vrsqrt.pop %v778
    %v781 = vmul.f32 %v778, %v780
    %vm782 = vcmp.eq.f32.partialorder %v778, inf
    %v783 = vsel %vm782, %v778, %v781
    %vm784 = vcmp.eq.f32.partialorder %v778, 0.0
    %v785 = vand.u32 %v778, 2147483648
    %v786 = vsel %vm784, %v785, %v783
    %v787 = vrsqrt.pop %v779
    %v788 = vmul.f32 %v779, %v787
    %vm789 = vcmp.eq.f32.partialorder %v779, inf
    %v790 = vsel %vm789, %v779, %v788
    %vm791 = vcmp.eq.f32.partialorder %v779, 0.0
    %v792 = vand.u32 %v779, 2147483648
    %v793 = vsel %vm791, %v792, %v790
    %v794 = vsel %vm107, %v786, -inf
    %v795 = vsel %vm107, %v793, -inf
    %v796 = vmax.f32 %v794, %v795
    %797 = vmax.xlane.f32.xlu0 %v796
    %v798 = vpop.xlane.xlu0 %797
    %v799 = vrot.slane %v798, 4
    %v800 = vmax.f32 %v798, %v799
    %v801 = vrot.slane %v800, 2
    %v802 = vmax.f32 %v800, %v801
    %v803 = vrot.slane %v802, 1
    %v804 = vmax.f32 %v802, %v803
    %s805 = vtos %v804
    %p806 = scmp.gt.f32.partialorder %s805, 0.0
    %v807 = vstv %s805
    %v808 = vrcp.pop %v807
    %s809 = vtos %v808
    %s810 = scalar_select %p806, %s809, 0.0
    %v811 = vstv %s810
    %v812 = vmul.f32 %v786, %v811
    %v813 = vmul.f32 %v793, %v811
    %v814 = vmax.f32 %v812, 0.0
    %v815 = vmax.f32 %v813, 0.0
    %v816 = vmin.f32 %v814, 1.0
    %v817 = vmin.f32 %v815, 1.0
    %v818 = vmul.f32 %v816, %v778
    %v819 = vmul.f32 %v817, %v779
    %v820 = vsel %vm107, %v818, 0.0
    %v821 = vsel %vm107, %v819, 0.0
    %v822 = vadd.f32 %v820, %v821
    %823 = vadd.xlane.f32.xlu0 %v822
    %v824 = vpop.xlane.xlu0 %823
    %v825 = vrot.slane %v824, 4
    %v826 = vadd.f32 %v824, %v825
    %v827 = vrot.slane %v826, 2
    %v828 = vadd.f32 %v826, %v827
    %v829 = vrot.slane %v828, 1
    %v830 = vadd.f32 %v828, %v829
    %s831 = vtos %v830
    %s832 = sadd.f32 %s660, %s831
    %833 = vmatprep.subr.mxu0 0.0
    %834 = vmatpush1.msra.mxu0 %v253
    %835 = vmatprep.subr.mxu0 0.0
    %836 = vmatpush1.msra.mxu0 %v258
    %837 = vmatprep.subr.mxu0 0.0
    %838 = vmatpush1.msra.mxu0 0.0
    %839 = vmatprep.subr.mxu0 0.0
    %840 = vmatpush1.msra.mxu0 0.0
    %841 = vmatprep.subr.mxu0 0.0
    %842 = vmatpush1.msra.mxu0 0.0
    %843 = vmatprep.subr.mxu0 0.0
    %844 = vmatpush1.msra.mxu0 0.0
    %845 = vmatprep.subr.mxu0 0.0
    %846 = vmatpush1.msra.mxu0 0.0
    %847 = vmatprep.subr.mxu0 0.0
    %848 = vmatpush1.msra.mxu0 0.0
    %849 = vmatprep.subr.mxu0 0.0
    %850 = vmatpush1.msra.mxu0 0.0
    %851 = vmatprep.subr.mxu0 0.0
    %852 = vmatpush1.msra.mxu0 0.0
    %853 = vmatprep.subr.mxu0 0.0
    %854 = vmatpush1.msra.mxu0 0.0
    %855 = vmatprep.subr.mxu0 0.0
    %856 = vmatpush1.msra.mxu0 0.0
    %857 = vmatprep.subr.mxu0 0.0
    %858 = vmatpush1.msra.mxu0 0.0
    %859 = vmatprep.subr.mxu0 0.0
    %860 = vmatpush1.msra.mxu0 0.0
    %861 = vmatprep.subr.mxu0 0.0
    %862 = vmatpush1.msra.mxu0 0.0
    %863 = vmatprep.subr.mxu0 0.0
    %864 = vmatpush1.msra.mxu0 0.0
    %865 = vmatprep.subr.mxu0 0.0
    %866 = vmatpush1.msra.mxu0 0.0
    %867 = vmatprep.subr.mxu0 0.0
    %868 = vmatpush1.msra.mxu0 0.0
    %869 = vmatprep.subr.mxu0 0.0
    %870 = vmatpush1.msra.mxu0 0.0
    %871 = vmatprep.subr.mxu0 0.0
    %872 = vmatpush1.msra.mxu0 0.0
    %873 = vmatprep.subr.mxu0 0.0
    %874 = vmatpush1.msra.mxu0 0.0
    %875 = vmatprep.subr.mxu0 0.0
    %876 = vmatpush1.msra.mxu0 0.0
    %877 = vmatprep.subr.mxu0 0.0
    %878 = vmatpush1.msra.mxu0 0.0
    %879 = vmatprep.subr.mxu0 0.0
    %880 = vmatpush1.msra.mxu0 0.0
    %881 = vmatprep.subr.mxu0 0.0
    %882 = vmatpush1.msra.mxu0 0.0
    %883 = vmatprep.subr.mxu0 0.0
    %884 = vmatpush1.msra.mxu0 0.0
    %885 = vmatprep.subr.mxu0 0.0
    %886 = vmatpush1.msra.mxu0 0.0
    %887 = vmatprep.subr.mxu0 0.0
    %888 = vmatpush1.msra.mxu0 0.0
    %889 = vmatprep.subr.mxu0 0.0
    %890 = vmatpush1.msra.mxu0 0.0
    %891 = vmatprep.subr.mxu0 0.0
    %892 = vmatpush1.msra.mxu0 0.0
    %893 = vmatprep.subr.mxu0 0.0
    %894 = vmatpush1.msra.mxu0 0.0
    %895 = vmatprep.subr.mxu0 0.0
    %896 = vmatpush1.msra.mxu0 0.0
    %897 = vmatprep.mubr.f32.mxu0 0.0
    %898 = vmatmul.mubr.f32.gmra.mrb[0].mxu0 %v306
    %v899 = vpop.f32.mrb[0].mxu0
    %v900 = vadd.f32 0.0, %v899
    %v901 = vpop.f32.mrb[0].mxu0
    %902 = vmatprep.mubr.f32.mxu0 0.0
    %903 = vmatmul.mubr.f32.gmra.mrb[0].mxu0 %v309
    %v904 = vpop.f32.mrb[0].mxu0
    %v905 = vadd.f32 0.0, %v904
    %v906 = vpop.f32.mrb[0].mxu0
    %907 = vmatprep.mubr.f32.mxu0 0.0
    %908 = vmatmul.mubr.f32.gmra.mrb[0].mxu0 %v312
    %v909 = vpop.f32.mrb[0].mxu0
    %v910 = vadd.f32 0.0, %v909
    %v911 = vpop.f32.mrb[0].mxu0
    %912 = vmatprep.mubr.f32.mxu0 0.0
    %913 = vmatmul.mubr.f32.gmra.mrb[0].mxu0 %v315
    %v914 = vpop.f32.mrb[0].mxu0
    %v915 = vadd.f32 0.0, %v914
    %v916 = vpop.f32.mrb[0].mxu0
    %917 = vdwg.mxu0
    %920 = vrot.lane.b32.xlu0 %v910, 112
    %v921 = vpop.permute.xlu0 %920
    %922 = vrot.lane.b32.xlu0 %v915, 112
    %v923 = vpop.permute.xlu0 %922
    %v926 = vsub.f32 %v900, %v921
    %v927 = vsub.f32 %v905, %v923
    %928 = vrot.lane.b32.xlu0 %v910, 16
    %v929 = vpop.permute.xlu0 %928
    %930 = vrot.lane.b32.xlu0 %v915, 16
    %v931 = vpop.permute.xlu0 %930
    %v934 = vadd.f32 %v900, %v929
    %v935 = vadd.f32 %v905, %v931
    %v936 = vsub.f32 0.0, %v934
    %v937 = vsub.f32 0.0, %v935
    %v938 = vmul.f32 %v926, %v926
    %v939 = vmul.f32 %v927, %v927
    %v940 = vmul.f32 %v936, %v936
    %v941 = vmul.f32 %v937, %v937
    %944 = vrot.lane.b32.xlu0 %v940, 112
    %v945 = vpop.permute.xlu0 %944
    %946 = vrot.lane.b32.xlu0 %v941, 112
    %v947 = vpop.permute.xlu0 %946
    %v950 = vadd.f32 %v938, %v945
    %v951 = vadd.f32 %v939, %v947
    %v952 = vrsqrt.pop %v950
    %v953 = vmul.f32 %v950, %v952
    %vm954 = vcmp.eq.f32.partialorder %v950, inf
    %v955 = vsel %vm954, %v950, %v953
    %vm956 = vcmp.eq.f32.partialorder %v950, 0.0
    %v957 = vand.u32 %v950, 2147483648
    %v958 = vsel %vm956, %v957, %v955
    %v959 = vrsqrt.pop %v951
    %v960 = vmul.f32 %v951, %v959
    %vm961 = vcmp.eq.f32.partialorder %v951, inf
    %v962 = vsel %vm961, %v951, %v960
    %vm963 = vcmp.eq.f32.partialorder %v951, 0.0
    %v964 = vand.u32 %v951, 2147483648
    %v965 = vsel %vm963, %v964, %v962
    %v966 = vsel %vm107, %v958, -inf
    %v967 = vsel %vm107, %v965, -inf
    %v968 = vmax.f32 %v966, %v967
    %969 = vmax.xlane.f32.xlu0 %v968
    %v970 = vpop.xlane.xlu0 %969
    %v971 = vrot.slane %v970, 4
    %v972 = vmax.f32 %v970, %v971
    %v973 = vrot.slane %v972, 2
    %v974 = vmax.f32 %v972, %v973
    %v975 = vrot.slane %v974, 1
    %v976 = vmax.f32 %v974, %v975
    %s977 = vtos %v976
    %p978 = scmp.gt.f32.partialorder %s977, 0.0
    %v979 = vstv %s977
    %v980 = vrcp.pop %v979
    %s981 = vtos %v980
    %s982 = scalar_select %p978, %s981, 0.0
    %v983 = vstv %s982
    %v984 = vmul.f32 %v958, %v983
    %v985 = vmul.f32 %v965, %v983
    %v986 = vmax.f32 %v984, 0.0
    %v987 = vmax.f32 %v985, 0.0
    %v988 = vmin.f32 %v986, 1.0
    %v989 = vmin.f32 %v987, 1.0
    %v990 = vmul.f32 %v988, %v950
    %v991 = vmul.f32 %v989, %v951
    %v992 = vsel %vm107, %v990, 0.0
    %v993 = vsel %vm107, %v991, 0.0
    %v994 = vadd.f32 %v992, %v993
    %995 = vadd.xlane.f32.xlu0 %v994
    %v996 = vpop.xlane.xlu0 %995
    %v997 = vrot.slane %v996, 4
    %v998 = vadd.f32 %v996, %v997
    %v999 = vrot.slane %v998, 2
    %v1000 = vadd.f32 %v998, %v999
    %v1001 = vrot.slane %v1000, 1
    %v1002 = vadd.f32 %v1000, %v1001
    %s1003 = vtos %v1002
    %s1004 = sadd.f32 %s832, %s1003
    %1005 = vmatprep.subr.mxu0 0.0
    %1006 = vmatpush1.msra.mxu0 %v263
    %1007 = vmatprep.subr.mxu0 0.0
    %1008 = vmatpush1.msra.mxu0 %v268
    %1009 = vmatprep.subr.mxu0 0.0
    %1010 = vmatpush1.msra.mxu0 0.0
    %1011 = vmatprep.subr.mxu0 0.0
    %1012 = vmatpush1.msra.mxu0 0.0
    %1013 = vmatprep.subr.mxu0 0.0
    %1014 = vmatpush1.msra.mxu0 0.0
    %1015 = vmatprep.subr.mxu0 0.0
    %1016 = vmatpush1.msra.mxu0 0.0
    %1017 = vmatprep.subr.mxu0 0.0
    %1018 = vmatpush1.msra.mxu0 0.0
    %1019 = vmatprep.subr.mxu0 0.0
    %1020 = vmatpush1.msra.mxu0 0.0
    %1021 = vmatprep.subr.mxu0 0.0
    %1022 = vmatpush1.msra.mxu0 0.0
    %1023 = vmatprep.subr.mxu0 0.0
    %1024 = vmatpush1.msra.mxu0 0.0
    %1025 = vmatprep.subr.mxu0 0.0
    %1026 = vmatpush1.msra.mxu0 0.0
    %1027 = vmatprep.subr.mxu0 0.0
    %1028 = vmatpush1.msra.mxu0 0.0
    %1029 = vmatprep.subr.mxu0 0.0
    %1030 = vmatpush1.msra.mxu0 0.0
    %1031 = vmatprep.subr.mxu0 0.0
    %1032 = vmatpush1.msra.mxu0 0.0
    %1033 = vmatprep.subr.mxu0 0.0
    %1034 = vmatpush1.msra.mxu0 0.0
    %1035 = vmatprep.subr.mxu0 0.0
    %1036 = vmatpush1.msra.mxu0 0.0
    %1037 = vmatprep.subr.mxu0 0.0
    %1038 = vmatpush1.msra.mxu0 0.0
    %1039 = vmatprep.subr.mxu0 0.0
    %1040 = vmatpush1.msra.mxu0 0.0
    %1041 = vmatprep.subr.mxu0 0.0
    %1042 = vmatpush1.msra.mxu0 0.0
    %1043 = vmatprep.subr.mxu0 0.0
    %1044 = vmatpush1.msra.mxu0 0.0
    %1045 = vmatprep.subr.mxu0 0.0
    %1046 = vmatpush1.msra.mxu0 0.0
    %1047 = vmatprep.subr.mxu0 0.0
    %1048 = vmatpush1.msra.mxu0 0.0
    %1049 = vmatprep.subr.mxu0 0.0
    %1050 = vmatpush1.msra.mxu0 0.0
    %1051 = vmatprep.subr.mxu0 0.0
    %1052 = vmatpush1.msra.mxu0 0.0
    %1053 = vmatprep.subr.mxu0 0.0
    %1054 = vmatpush1.msra.mxu0 0.0
    %1055 = vmatprep.subr.mxu0 0.0
    %1056 = vmatpush1.msra.mxu0 0.0
    %1057 = vmatprep.subr.mxu0 0.0
    %1058 = vmatpush1.msra.mxu0 0.0
    %1059 = vmatprep.subr.mxu0 0.0
    %1060 = vmatpush1.msra.mxu0 0.0
    %1061 = vmatprep.subr.mxu0 0.0
    %1062 = vmatpush1.msra.mxu0 0.0
    %1063 = vmatprep.subr.mxu0 0.0
    %1064 = vmatpush1.msra.mxu0 0.0
    %1065 = vmatprep.subr.mxu0 0.0
    %1066 = vmatpush1.msra.mxu0 0.0
    %1067 = vmatprep.subr.mxu0 0.0
    %1068 = vmatpush1.msra.mxu0 0.0
    %1069 = vmatprep.mubr.f32.mxu0 0.0
    %1070 = vmatmul.mubr.f32.gmra.mrb[0].mxu0 %v306
    %v1071 = vpop.f32.mrb[0].mxu0
    %v1072 = vadd.f32 0.0, %v1071
    %v1073 = vpop.f32.mrb[0].mxu0
    %1074 = vmatprep.mubr.f32.mxu0 0.0
    %1075 = vmatmul.mubr.f32.gmra.mrb[0].mxu0 %v309
    %v1076 = vpop.f32.mrb[0].mxu0
    %v1077 = vadd.f32 0.0, %v1076
    %v1078 = vpop.f32.mrb[0].mxu0
    %1079 = vmatprep.mubr.f32.mxu0 0.0
    %1080 = vmatmul.mubr.f32.gmra.mrb[0].mxu0 %v312
    %v1081 = vpop.f32.mrb[0].mxu0
    %v1082 = vadd.f32 0.0, %v1081
    %v1083 = vpop.f32.mrb[0].mxu0
    %1084 = vmatprep.mubr.f32.mxu0 0.0
    %1085 = vmatmul.mubr.f32.gmra.mrb[0].mxu0 %v315
    %v1086 = vpop.f32.mrb[0].mxu0
    %v1087 = vadd.f32 0.0, %v1086
    %v1088 = vpop.f32.mrb[0].mxu0
    %1089 = vdwg.mxu0
    %1092 = vrot.lane.b32.xlu0 %v1082, 112
    %v1093 = vpop.permute.xlu0 %1092
    %1094 = vrot.lane.b32.xlu0 %v1087, 112
    %v1095 = vpop.permute.xlu0 %1094
    %v1098 = vsub.f32 %v1072, %v1093
    %v1099 = vsub.f32 %v1077, %v1095
    %1100 = vrot.lane.b32.xlu0 %v1082, 16
    %v1101 = vpop.permute.xlu0 %1100
    %1102 = vrot.lane.b32.xlu0 %v1087, 16
    %v1103 = vpop.permute.xlu0 %1102
    %v1106 = vadd.f32 %v1072, %v1101
    %v1107 = vadd.f32 %v1077, %v1103
    %v1108 = vsub.f32 0.0, %v1106
    %v1109 = vsub.f32 0.0, %v1107
    %v1110 = vmul.f32 %v1098, %v1098
    %v1111 = vmul.f32 %v1099, %v1099
    %v1112 = vmul.f32 %v1108, %v1108
    %v1113 = vmul.f32 %v1109, %v1109
    %1116 = vrot.lane.b32.xlu0 %v1112, 112
    %v1117 = vpop.permute.xlu0 %1116
    %1118 = vrot.lane.b32.xlu0 %v1113, 112
    %v1119 = vpop.permute.xlu0 %1118
    %v1122 = vadd.f32 %v1110, %v1117
    %v1123 = vadd.f32 %v1111, %v1119
    %v1124 = vrsqrt.pop %v1122
    %v1125 = vmul.f32 %v1122, %v1124
    %vm1126 = vcmp.eq.f32.partialorder %v1122, inf
    %v1127 = vsel %vm1126, %v1122, %v1125
    %vm1128 = vcmp.eq.f32.partialorder %v1122, 0.0
    %v1129 = vand.u32 %v1122, 2147483648
    %v1130 = vsel %vm1128, %v1129, %v1127
    %v1131 = vrsqrt.pop %v1123
    %v1132 = vmul.f32 %v1123, %v1131
    %vm1133 = vcmp.eq.f32.partialorder %v1123, inf
    %v1134 = vsel %vm1133, %v1123, %v1132
    %vm1135 = vcmp.eq.f32.partialorder %v1123, 0.0
    %v1136 = vand.u32 %v1123, 2147483648
    %v1137 = vsel %vm1135, %v1136, %v1134
    %v1138 = vsel %vm107, %v1130, -inf
    %v1139 = vsel %vm107, %v1137, -inf
    %v1140 = vmax.f32 %v1138, %v1139
    %1141 = vmax.xlane.f32.xlu0 %v1140
    %v1142 = vpop.xlane.xlu0 %1141
    %v1143 = vrot.slane %v1142, 4
    %v1144 = vmax.f32 %v1142, %v1143
    %v1145 = vrot.slane %v1144, 2
    %v1146 = vmax.f32 %v1144, %v1145
    %v1147 = vrot.slane %v1146, 1
    %v1148 = vmax.f32 %v1146, %v1147
    %s1149 = vtos %v1148
    %p1150 = scmp.gt.f32.partialorder %s1149, 0.0
    %v1151 = vstv %s1149
    %v1152 = vrcp.pop %v1151
    %s1153 = vtos %v1152
    %s1154 = scalar_select %p1150, %s1153, 0.0
    %v1155 = vstv %s1154
    %v1156 = vmul.f32 %v1130, %v1155
    %v1157 = vmul.f32 %v1137, %v1155
    %v1158 = vmax.f32 %v1156, 0.0
    %v1159 = vmax.f32 %v1157, 0.0
    %v1160 = vmin.f32 %v1158, 1.0
    %v1161 = vmin.f32 %v1159, 1.0
    %v1162 = vmul.f32 %v1160, %v1122
    %v1163 = vmul.f32 %v1161, %v1123
    %v1164 = vsel %vm107, %v1162, 0.0
    %v1165 = vsel %vm107, %v1163, 0.0
    %v1166 = vadd.f32 %v1164, %v1165
    %1167 = vadd.xlane.f32.xlu0 %v1166
    %v1168 = vpop.xlane.xlu0 %1167
    %v1169 = vrot.slane %v1168, 4
    %v1170 = vadd.f32 %v1168, %v1169
    %v1171 = vrot.slane %v1170, 2
    %v1172 = vadd.f32 %v1170, %v1171
    %v1173 = vrot.slane %v1172, 1
    %v1174 = vadd.f32 %v1172, %v1173
    %s1175 = vtos %v1174
    %s1176 = sadd.f32 %s1004, %s1175
    %1177 = vmatprep.subr.mxu0 0.0
    %1178 = vmatpush1.msra.mxu0 %v273
    %1179 = vmatprep.subr.mxu0 0.0
    %1180 = vmatpush1.msra.mxu0 %v278
    %1181 = vmatprep.subr.mxu0 0.0
    %1182 = vmatpush1.msra.mxu0 0.0
    %1183 = vmatprep.subr.mxu0 0.0
    %1184 = vmatpush1.msra.mxu0 0.0
    %1185 = vmatprep.subr.mxu0 0.0
    %1186 = vmatpush1.msra.mxu0 0.0
    %1187 = vmatprep.subr.mxu0 0.0
    %1188 = vmatpush1.msra.mxu0 0.0
    %1189 = vmatprep.subr.mxu0 0.0
    %1190 = vmatpush1.msra.mxu0 0.0
    %1191 = vmatprep.subr.mxu0 0.0
    %1192 = vmatpush1.msra.mxu0 0.0
    %1193 = vmatprep.subr.mxu0 0.0
    %1194 = vmatpush1.msra.mxu0 0.0
    %1195 = vmatprep.subr.mxu0 0.0
    %1196 = vmatpush1.msra.mxu0 0.0
    %1197 = vmatprep.subr.mxu0 0.0
    %1198 = vmatpush1.msra.mxu0 0.0
    %1199 = vmatprep.subr.mxu0 0.0
    %1200 = vmatpush1.msra.mxu0 0.0
    %1201 = vmatprep.subr.mxu0 0.0
    %1202 = vmatpush1.msra.mxu0 0.0
    %1203 = vmatprep.subr.mxu0 0.0
    %1204 = vmatpush1.msra.mxu0 0.0
    %1205 = vmatprep.subr.mxu0 0.0
    %1206 = vmatpush1.msra.mxu0 0.0
    %1207 = vmatprep.subr.mxu0 0.0
    %1208 = vmatpush1.msra.mxu0 0.0
    %1209 = vmatprep.subr.mxu0 0.0
    %1210 = vmatpush1.msra.mxu0 0.0
    %1211 = vmatprep.subr.mxu0 0.0
    %1212 = vmatpush1.msra.mxu0 0.0
    %1213 = vmatprep.subr.mxu0 0.0
    %1214 = vmatpush1.msra.mxu0 0.0
    %1215 = vmatprep.subr.mxu0 0.0
    %1216 = vmatpush1.msra.mxu0 0.0
    %1217 = vmatprep.subr.mxu0 0.0
    %1218 = vmatpush1.msra.mxu0 0.0
    %1219 = vmatprep.subr.mxu0 0.0
    %1220 = vmatpush1.msra.mxu0 0.0
    %1221 = vmatprep.subr.mxu0 0.0
    %1222 = vmatpush1.msra.mxu0 0.0
    %1223 = vmatprep.subr.mxu0 0.0
    %1224 = vmatpush1.msra.mxu0 0.0
    %1225 = vmatprep.subr.mxu0 0.0
    %1226 = vmatpush1.msra.mxu0 0.0
    %1227 = vmatprep.subr.mxu0 0.0
    %1228 = vmatpush1.msra.mxu0 0.0
    %1229 = vmatprep.subr.mxu0 0.0
    %1230 = vmatpush1.msra.mxu0 0.0
    %1231 = vmatprep.subr.mxu0 0.0
    %1232 = vmatpush1.msra.mxu0 0.0
    %1233 = vmatprep.subr.mxu0 0.0
    %1234 = vmatpush1.msra.mxu0 0.0
    %1235 = vmatprep.subr.mxu0 0.0
    %1236 = vmatpush1.msra.mxu0 0.0
    %1237 = vmatprep.subr.mxu0 0.0
    %1238 = vmatpush1.msra.mxu0 0.0
    %1239 = vmatprep.subr.mxu0 0.0
    %1240 = vmatpush1.msra.mxu0 0.0
    %1241 = vmatprep.mubr.f32.mxu0 0.0
    %1242 = vmatmul.mubr.f32.gmra.mrb[0].mxu0 %v306
    %v1243 = vpop.f32.mrb[0].mxu0
    %v1244 = vadd.f32 0.0, %v1243
    %v1245 = vpop.f32.mrb[0].mxu0
    %1246 = vmatprep.mubr.f32.mxu0 0.0
    %1247 = vmatmul.mubr.f32.gmra.mrb[0].mxu0 %v309
    %v1248 = vpop.f32.mrb[0].mxu0
    %v1249 = vadd.f32 0.0, %v1248
    %v1250 = vpop.f32.mrb[0].mxu0
    %1251 = vmatprep.mubr.f32.mxu0 0.0
    %1252 = vmatmul.mubr.f32.gmra.mrb[0].mxu0 %v312
    %v1253 = vpop.f32.mrb[0].mxu0
    %v1254 = vadd.f32 0.0, %v1253
    %v1255 = vpop.f32.mrb[0].mxu0
    %1256 = vmatprep.mubr.f32.mxu0 0.0
    %1257 = vmatmul.mubr.f32.gmra.mrb[0].mxu0 %v315
    %v1258 = vpop.f32.mrb[0].mxu0
    %v1259 = vadd.f32 0.0, %v1258
    %v1260 = vpop.f32.mrb[0].mxu0
    %1261 = vdwg.mxu0
    %1264 = vrot.lane.b32.xlu0 %v1254, 112
    %v1265 = vpop.permute.xlu0 %1264
    %1266 = vrot.lane.b32.xlu0 %v1259, 112
    %v1267 = vpop.permute.xlu0 %1266
    %v1270 = vsub.f32 %v1244, %v1265
    %v1271 = vsub.f32 %v1249, %v1267
    %1272 = vrot.lane.b32.xlu0 %v1254, 16
    %v1273 = vpop.permute.xlu0 %1272
    %1274 = vrot.lane.b32.xlu0 %v1259, 16
    %v1275 = vpop.permute.xlu0 %1274
    %v1278 = vadd.f32 %v1244, %v1273
    %v1279 = vadd.f32 %v1249, %v1275
    %v1280 = vsub.f32 0.0, %v1278
    %v1281 = vsub.f32 0.0, %v1279
    %v1282 = vmul.f32 %v1270, %v1270
    %v1283 = vmul.f32 %v1271, %v1271
    %v1284 = vmul.f32 %v1280, %v1280
    %v1285 = vmul.f32 %v1281, %v1281
    %1288 = vrot.lane.b32.xlu0 %v1284, 112
    %v1289 = vpop.permute.xlu0 %1288
    %1290 = vrot.lane.b32.xlu0 %v1285, 112
    %v1291 = vpop.permute.xlu0 %1290
    %v1294 = vadd.f32 %v1282, %v1289
    %v1295 = vadd.f32 %v1283, %v1291
    %v1296 = vrsqrt.pop %v1294
    %v1297 = vmul.f32 %v1294, %v1296
    %vm1298 = vcmp.eq.f32.partialorder %v1294, inf
    %v1299 = vsel %vm1298, %v1294, %v1297
    %vm1300 = vcmp.eq.f32.partialorder %v1294, 0.0
    %v1301 = vand.u32 %v1294, 2147483648
    %v1302 = vsel %vm1300, %v1301, %v1299
    %v1303 = vrsqrt.pop %v1295
    %v1304 = vmul.f32 %v1295, %v1303
    %vm1305 = vcmp.eq.f32.partialorder %v1295, inf
    %v1306 = vsel %vm1305, %v1295, %v1304
    %vm1307 = vcmp.eq.f32.partialorder %v1295, 0.0
    %v1308 = vand.u32 %v1295, 2147483648
    %v1309 = vsel %vm1307, %v1308, %v1306
    %v1310 = vsel %vm107, %v1302, -inf
    %v1311 = vsel %vm107, %v1309, -inf
    %v1312 = vmax.f32 %v1310, %v1311
    %1313 = vmax.xlane.f32.xlu0 %v1312
    %v1314 = vpop.xlane.xlu0 %1313
    %v1315 = vrot.slane %v1314, 4
    %v1316 = vmax.f32 %v1314, %v1315
    %v1317 = vrot.slane %v1316, 2
    %v1318 = vmax.f32 %v1316, %v1317
    %v1319 = vrot.slane %v1318, 1
    %v1320 = vmax.f32 %v1318, %v1319
    %s1321 = vtos %v1320
    %p1322 = scmp.gt.f32.partialorder %s1321, 0.0
    %v1323 = vstv %s1321
    %v1324 = vrcp.pop %v1323
    %s1325 = vtos %v1324
    %s1326 = scalar_select %p1322, %s1325, 0.0
    %v1327 = vstv %s1326
    %v1328 = vmul.f32 %v1302, %v1327
    %v1329 = vmul.f32 %v1309, %v1327
    %v1330 = vmax.f32 %v1328, 0.0
    %v1331 = vmax.f32 %v1329, 0.0
    %v1332 = vmin.f32 %v1330, 1.0
    %v1333 = vmin.f32 %v1331, 1.0
    %v1334 = vmul.f32 %v1332, %v1294
    %v1335 = vmul.f32 %v1333, %v1295
    %v1336 = vsel %vm107, %v1334, 0.0
    %v1337 = vsel %vm107, %v1335, 0.0
    %v1338 = vadd.f32 %v1336, %v1337
    %1339 = vadd.xlane.f32.xlu0 %v1338
    %v1340 = vpop.xlane.xlu0 %1339
    %v1341 = vrot.slane %v1340, 4
    %v1342 = vadd.f32 %v1340, %v1341
    %v1343 = vrot.slane %v1342, 2
    %v1344 = vadd.f32 %v1342, %v1343
    %v1345 = vrot.slane %v1344, 1
    %v1346 = vadd.f32 %v1344, %v1345
    %s1347 = vtos %v1346
    %s1348 = sadd.f32 %s1176, %s1347
    %1349 = vmatprep.subr.mxu0 0.0
    %1350 = vmatpush1.msra.mxu0 %v283
    %1351 = vmatprep.subr.mxu0 0.0
    %1352 = vmatpush1.msra.mxu0 %v288
    %1353 = vmatprep.subr.mxu0 0.0
    %1354 = vmatpush1.msra.mxu0 0.0
    %1355 = vmatprep.subr.mxu0 0.0
    %1356 = vmatpush1.msra.mxu0 0.0
    %1357 = vmatprep.subr.mxu0 0.0
    %1358 = vmatpush1.msra.mxu0 0.0
    %1359 = vmatprep.subr.mxu0 0.0
    %1360 = vmatpush1.msra.mxu0 0.0
    %1361 = vmatprep.subr.mxu0 0.0
    %1362 = vmatpush1.msra.mxu0 0.0
    %1363 = vmatprep.subr.mxu0 0.0
    %1364 = vmatpush1.msra.mxu0 0.0
    %1365 = vmatprep.subr.mxu0 0.0
    %1366 = vmatpush1.msra.mxu0 0.0
    %1367 = vmatprep.subr.mxu0 0.0
    %1368 = vmatpush1.msra.mxu0 0.0
    %1369 = vmatprep.subr.mxu0 0.0
    %1370 = vmatpush1.msra.mxu0 0.0
    %1371 = vmatprep.subr.mxu0 0.0
    %1372 = vmatpush1.msra.mxu0 0.0
    %1373 = vmatprep.subr.mxu0 0.0
    %1374 = vmatpush1.msra.mxu0 0.0
    %1375 = vmatprep.subr.mxu0 0.0
    %1376 = vmatpush1.msra.mxu0 0.0
    %1377 = vmatprep.subr.mxu0 0.0
    %1378 = vmatpush1.msra.mxu0 0.0
    %1379 = vmatprep.subr.mxu0 0.0
    %1380 = vmatpush1.msra.mxu0 0.0
    %1381 = vmatprep.subr.mxu0 0.0
    %1382 = vmatpush1.msra.mxu0 0.0
    %1383 = vmatprep.subr.mxu0 0.0
    %1384 = vmatpush1.msra.mxu0 0.0
    %1385 = vmatprep.subr.mxu0 0.0
    %1386 = vmatpush1.msra.mxu0 0.0
    %1387 = vmatprep.subr.mxu0 0.0
    %1388 = vmatpush1.msra.mxu0 0.0
    %1389 = vmatprep.subr.mxu0 0.0
    %1390 = vmatpush1.msra.mxu0 0.0
    %1391 = vmatprep.subr.mxu0 0.0
    %1392 = vmatpush1.msra.mxu0 0.0
    %1393 = vmatprep.subr.mxu0 0.0
    %1394 = vmatpush1.msra.mxu0 0.0
    %1395 = vmatprep.subr.mxu0 0.0
    %1396 = vmatpush1.msra.mxu0 0.0
    %1397 = vmatprep.subr.mxu0 0.0
    %1398 = vmatpush1.msra.mxu0 0.0
    %1399 = vmatprep.subr.mxu0 0.0
    %1400 = vmatpush1.msra.mxu0 0.0
    %1401 = vmatprep.subr.mxu0 0.0
    %1402 = vmatpush1.msra.mxu0 0.0
    %1403 = vmatprep.subr.mxu0 0.0
    %1404 = vmatpush1.msra.mxu0 0.0
    %1405 = vmatprep.subr.mxu0 0.0
    %1406 = vmatpush1.msra.mxu0 0.0
    %1407 = vmatprep.subr.mxu0 0.0
    %1408 = vmatpush1.msra.mxu0 0.0
    %1409 = vmatprep.subr.mxu0 0.0
    %1410 = vmatpush1.msra.mxu0 0.0
    %1411 = vmatprep.subr.mxu0 0.0
    %1412 = vmatpush1.msra.mxu0 0.0
    %1413 = vmatprep.mubr.f32.mxu0 0.0
    %1414 = vmatmul.mubr.f32.gmra.mrb[0].mxu0 %v306
    %v1415 = vpop.f32.mrb[0].mxu0
    %v1416 = vadd.f32 0.0, %v1415
    %v1417 = vpop.f32.mrb[0].mxu0
    %1418 = vmatprep.mubr.f32.mxu0 0.0
    %1419 = vmatmul.mubr.f32.gmra.mrb[0].mxu0 %v309
    %v1420 = vpop.f32.mrb[0].mxu0
    %v1421 = vadd.f32 0.0, %v1420
    %v1422 = vpop.f32.mrb[0].mxu0
    %1423 = vmatprep.mubr.f32.mxu0 0.0
    %1424 = vmatmul.mubr.f32.gmra.mrb[0].mxu0 %v312
    %v1425 = vpop.f32.mrb[0].mxu0
    %v1426 = vadd.f32 0.0, %v1425
    %v1427 = vpop.f32.mrb[0].mxu0
    %1428 = vmatprep.mubr.f32.mxu0 0.0
    %1429 = vmatmul.mubr.f32.gmra.mrb[0].mxu0 %v315
    %v1430 = vpop.f32.mrb[0].mxu0
    %v1431 = vadd.f32 0.0, %v1430
    %v1432 = vpop.f32.mrb[0].mxu0
    %1433 = vdwg.mxu0
    %1436 = vrot.lane.b32.xlu0 %v1426, 112
    %v1437 = vpop.permute.xlu0 %1436
    %1438 = vrot.lane.b32.xlu0 %v1431, 112
    %v1439 = vpop.permute.xlu0 %1438
    %v1442 = vsub.f32 %v1416, %v1437
    %v1443 = vsub.f32 %v1421, %v1439
    %1444 = vrot.lane.b32.xlu0 %v1426, 16
    %v1445 = vpop.permute.xlu0 %1444
    %1446 = vrot.lane.b32.xlu0 %v1431, 16
    %v1447 = vpop.permute.xlu0 %1446
    %v1450 = vadd.f32 %v1416, %v1445
    %v1451 = vadd.f32 %v1421, %v1447
    %v1452 = vsub.f32 0.0, %v1450
    %v1453 = vsub.f32 0.0, %v1451
    %v1454 = vmul.f32 %v1442, %v1442
    %v1455 = vmul.f32 %v1443, %v1443
    %v1456 = vmul.f32 %v1452, %v1452
    %v1457 = vmul.f32 %v1453, %v1453
    %1460 = vrot.lane.b32.xlu0 %v1456, 112
    %v1461 = vpop.permute.xlu0 %1460
    %1462 = vrot.lane.b32.xlu0 %v1457, 112
    %v1463 = vpop.permute.xlu0 %1462
    %v1466 = vadd.f32 %v1454, %v1461
    %v1467 = vadd.f32 %v1455, %v1463
    %v1468 = vrsqrt.pop %v1466
    %v1469 = vmul.f32 %v1466, %v1468
    %vm1470 = vcmp.eq.f32.partialorder %v1466, inf
    %v1471 = vsel %vm1470, %v1466, %v1469
    %vm1472 = vcmp.eq.f32.partialorder %v1466, 0.0
    %v1473 = vand.u32 %v1466, 2147483648
    %v1474 = vsel %vm1472, %v1473, %v1471
    %v1475 = vrsqrt.pop %v1467
    %v1476 = vmul.f32 %v1467, %v1475
    %vm1477 = vcmp.eq.f32.partialorder %v1467, inf
    %v1478 = vsel %vm1477, %v1467, %v1476
    %vm1479 = vcmp.eq.f32.partialorder %v1467, 0.0
    %v1480 = vand.u32 %v1467, 2147483648
    %v1481 = vsel %vm1479, %v1480, %v1478
    %v1482 = vsel %vm107, %v1474, -inf
    %v1483 = vsel %vm107, %v1481, -inf
    %v1484 = vmax.f32 %v1482, %v1483
    %1485 = vmax.xlane.f32.xlu0 %v1484
    %v1486 = vpop.xlane.xlu0 %1485
    %v1487 = vrot.slane %v1486, 4
    %v1488 = vmax.f32 %v1486, %v1487
    %v1489 = vrot.slane %v1488, 2
    %v1490 = vmax.f32 %v1488, %v1489
    %v1491 = vrot.slane %v1490, 1
    %v1492 = vmax.f32 %v1490, %v1491
    %s1493 = vtos %v1492
    %p1494 = scmp.gt.f32.partialorder %s1493, 0.0
    %v1495 = vstv %s1493
    %v1496 = vrcp.pop %v1495
    %s1497 = vtos %v1496
    %s1498 = scalar_select %p1494, %s1497, 0.0
    %v1499 = vstv %s1498
    %v1500 = vmul.f32 %v1474, %v1499
    %v1501 = vmul.f32 %v1481, %v1499
    %v1502 = vmax.f32 %v1500, 0.0
    %v1503 = vmax.f32 %v1501, 0.0
    %v1504 = vmin.f32 %v1502, 1.0
    %v1505 = vmin.f32 %v1503, 1.0
    %v1506 = vmul.f32 %v1504, %v1466
    %v1507 = vmul.f32 %v1505, %v1467
    %v1508 = vsel %vm107, %v1506, 0.0
    %v1509 = vsel %vm107, %v1507, 0.0
    %v1510 = vadd.f32 %v1508, %v1509
    %1511 = vadd.xlane.f32.xlu0 %v1510
    %v1512 = vpop.xlane.xlu0 %1511
    %v1513 = vrot.slane %v1512, 4
    %v1514 = vadd.f32 %v1512, %v1513
    %v1515 = vrot.slane %v1514, 2
    %v1516 = vadd.f32 %v1514, %v1515
    %v1517 = vrot.slane %v1516, 1
    %v1518 = vadd.f32 %v1516, %v1517
    %s1519 = vtos %v1518
    %s1520 = sadd.f32 %s1348, %s1519
    %1521 = vmatprep.subr.mxu0 0.0
    %1522 = vmatpush1.msra.mxu0 %v293
    %1523 = vmatprep.subr.mxu0 0.0
    %1524 = vmatpush1.msra.mxu0 %v298
    %1525 = vmatprep.subr.mxu0 0.0
    %1526 = vmatpush1.msra.mxu0 0.0
    %1527 = vmatprep.subr.mxu0 0.0
    %1528 = vmatpush1.msra.mxu0 0.0
    %1529 = vmatprep.subr.mxu0 0.0
    %1530 = vmatpush1.msra.mxu0 0.0
    %1531 = vmatprep.subr.mxu0 0.0
    %1532 = vmatpush1.msra.mxu0 0.0
    %1533 = vmatprep.subr.mxu0 0.0
    %1534 = vmatpush1.msra.mxu0 0.0
    %1535 = vmatprep.subr.mxu0 0.0
    %1536 = vmatpush1.msra.mxu0 0.0
    %1537 = vmatprep.subr.mxu0 0.0
    %1538 = vmatpush1.msra.mxu0 0.0
    %1539 = vmatprep.subr.mxu0 0.0
    %1540 = vmatpush1.msra.mxu0 0.0
    %1541 = vmatprep.subr.mxu0 0.0
    %1542 = vmatpush1.msra.mxu0 0.0
    %1543 = vmatprep.subr.mxu0 0.0
    %1544 = vmatpush1.msra.mxu0 0.0
    %1545 = vmatprep.subr.mxu0 0.0
    %1546 = vmatpush1.msra.mxu0 0.0
    %1547 = vmatprep.subr.mxu0 0.0
    %1548 = vmatpush1.msra.mxu0 0.0
    %1549 = vmatprep.subr.mxu0 0.0
    %1550 = vmatpush1.msra.mxu0 0.0
    %1551 = vmatprep.subr.mxu0 0.0
    %1552 = vmatpush1.msra.mxu0 0.0
    %1553 = vmatprep.subr.mxu0 0.0
    %1554 = vmatpush1.msra.mxu0 0.0
    %1555 = vmatprep.subr.mxu0 0.0
    %1556 = vmatpush1.msra.mxu0 0.0
    %1557 = vmatprep.subr.mxu0 0.0
    %1558 = vmatpush1.msra.mxu0 0.0
    %1559 = vmatprep.subr.mxu0 0.0
    %1560 = vmatpush1.msra.mxu0 0.0
    %1561 = vmatprep.subr.mxu0 0.0
    %1562 = vmatpush1.msra.mxu0 0.0
    %1563 = vmatprep.subr.mxu0 0.0
    %1564 = vmatpush1.msra.mxu0 0.0
    %1565 = vmatprep.subr.mxu0 0.0
    %1566 = vmatpush1.msra.mxu0 0.0
    %1567 = vmatprep.subr.mxu0 0.0
    %1568 = vmatpush1.msra.mxu0 0.0
    %1569 = vmatprep.subr.mxu0 0.0
    %1570 = vmatpush1.msra.mxu0 0.0
    %1571 = vmatprep.subr.mxu0 0.0
    %1572 = vmatpush1.msra.mxu0 0.0
    %1573 = vmatprep.subr.mxu0 0.0
    %1574 = vmatpush1.msra.mxu0 0.0
    %1575 = vmatprep.subr.mxu0 0.0
    %1576 = vmatpush1.msra.mxu0 0.0
    %1577 = vmatprep.subr.mxu0 0.0
    %1578 = vmatpush1.msra.mxu0 0.0
    %1579 = vmatprep.subr.mxu0 0.0
    %1580 = vmatpush1.msra.mxu0 0.0
    %1581 = vmatprep.subr.mxu0 0.0
    %1582 = vmatpush1.msra.mxu0 0.0
    %1583 = vmatprep.subr.mxu0 0.0
    %1584 = vmatpush1.msra.mxu0 0.0
    %1585 = vmatprep.mubr.f32.mxu0 0.0
    %1586 = vmatmul.mubr.f32.gmra.mrb[0].mxu0 %v306
    %v1587 = vpop.f32.mrb[0].mxu0
    %v1588 = vadd.f32 0.0, %v1587
    %v1589 = vpop.f32.mrb[0].mxu0
    %1590 = vmatprep.mubr.f32.mxu0 0.0
    %1591 = vmatmul.mubr.f32.gmra.mrb[0].mxu0 %v309
    %v1592 = vpop.f32.mrb[0].mxu0
    %v1593 = vadd.f32 0.0, %v1592
    %v1594 = vpop.f32.mrb[0].mxu0
    %1595 = vmatprep.mubr.f32.mxu0 0.0
    %1596 = vmatmul.mubr.f32.gmra.mrb[0].mxu0 %v312
    %v1597 = vpop.f32.mrb[0].mxu0
    %v1598 = vadd.f32 0.0, %v1597
    %v1599 = vpop.f32.mrb[0].mxu0
    %1600 = vmatprep.mubr.f32.mxu0 0.0
    %1601 = vmatmul.mubr.f32.gmra.mrb[0].mxu0 %v315
    %v1602 = vpop.f32.mrb[0].mxu0
    %v1603 = vadd.f32 0.0, %v1602
    %v1604 = vpop.f32.mrb[0].mxu0
    %1605 = vdwg.mxu0
    %1608 = vrot.lane.b32.xlu0 %v1598, 112
    %v1609 = vpop.permute.xlu0 %1608
    %1610 = vrot.lane.b32.xlu0 %v1603, 112
    %v1611 = vpop.permute.xlu0 %1610
    %v1614 = vsub.f32 %v1588, %v1609
    %v1615 = vsub.f32 %v1593, %v1611
    %1616 = vrot.lane.b32.xlu0 %v1598, 16
    %v1617 = vpop.permute.xlu0 %1616
    %1618 = vrot.lane.b32.xlu0 %v1603, 16
    %v1619 = vpop.permute.xlu0 %1618
    %v1622 = vadd.f32 %v1588, %v1617
    %v1623 = vadd.f32 %v1593, %v1619
    %v1624 = vsub.f32 0.0, %v1622
    %v1625 = vsub.f32 0.0, %v1623
    %v1626 = vmul.f32 %v1614, %v1614
    %v1627 = vmul.f32 %v1615, %v1615
    %v1628 = vmul.f32 %v1624, %v1624
    %v1629 = vmul.f32 %v1625, %v1625
    %1632 = vrot.lane.b32.xlu0 %v1628, 112
    %v1633 = vpop.permute.xlu0 %1632
    %1634 = vrot.lane.b32.xlu0 %v1629, 112
    %v1635 = vpop.permute.xlu0 %1634
    %v1638 = vadd.f32 %v1626, %v1633
    %v1639 = vadd.f32 %v1627, %v1635
    %v1640 = vrsqrt.pop %v1638
    %v1641 = vmul.f32 %v1638, %v1640
    %vm1642 = vcmp.eq.f32.partialorder %v1638, inf
    %v1643 = vsel %vm1642, %v1638, %v1641
    %vm1644 = vcmp.eq.f32.partialorder %v1638, 0.0
    %v1645 = vand.u32 %v1638, 2147483648
    %v1646 = vsel %vm1644, %v1645, %v1643
    %v1647 = vrsqrt.pop %v1639
    %v1648 = vmul.f32 %v1639, %v1647
    %vm1649 = vcmp.eq.f32.partialorder %v1639, inf
    %v1650 = vsel %vm1649, %v1639, %v1648
    %vm1651 = vcmp.eq.f32.partialorder %v1639, 0.0
    %v1652 = vand.u32 %v1639, 2147483648
    %v1653 = vsel %vm1651, %v1652, %v1650
    %v1654 = vsel %vm107, %v1646, -inf
    %v1655 = vsel %vm107, %v1653, -inf
    %v1656 = vmax.f32 %v1654, %v1655
    %1657 = vmax.xlane.f32.xlu0 %v1656
    %v1658 = vpop.xlane.xlu0 %1657
    %v1659 = vrot.slane %v1658, 4
    %v1660 = vmax.f32 %v1658, %v1659
    %v1661 = vrot.slane %v1660, 2
    %v1662 = vmax.f32 %v1660, %v1661
    %v1663 = vrot.slane %v1662, 1
    %v1664 = vmax.f32 %v1662, %v1663
    %s1665 = vtos %v1664
    %p1666 = scmp.gt.f32.partialorder %s1665, 0.0
    %v1667 = vstv %s1665
    %v1668 = vrcp.pop %v1667
    %s1669 = vtos %v1668
    %s1670 = scalar_select %p1666, %s1669, 0.0
    %v1671 = vstv %s1670
    %v1672 = vmul.f32 %v1646, %v1671
    %v1673 = vmul.f32 %v1653, %v1671
    %v1674 = vmax.f32 %v1672, 0.0
    %v1675 = vmax.f32 %v1673, 0.0
    %v1676 = vmin.f32 %v1674, 1.0
    %v1677 = vmin.f32 %v1675, 1.0
    %v1678 = vmul.f32 %v1676, %v1638
    %v1679 = vmul.f32 %v1677, %v1639
    %v1680 = vsel %vm107, %v1678, 0.0
    %v1681 = vsel %vm107, %v1679, 0.0
    %v1682 = vadd.f32 %v1680, %v1681
    %1683 = vadd.xlane.f32.xlu0 %v1682
    %v1684 = vpop.xlane.xlu0 %1683
    %v1685 = vrot.slane %v1684, 4
    %v1686 = vadd.f32 %v1684, %v1685
    %v1687 = vrot.slane %v1686, 2
    %v1688 = vadd.f32 %v1686, %v1687
    %v1689 = vrot.slane %v1688, 1
    %v1690 = vadd.f32 %v1688, %v1689
    %s1691 = vtos %v1690
    %s1692 = sadd.f32 %s1520, %s1691
    %v1693 = vld [vmem:[#allocation7] sm:$0x1]
    %v1694 = vstv %s1692
    %v1695 = vadd.f32 %v1693, %v1694
    %vm1696 = vcmask 0
    %1697 = vst.msk [vmem:[#allocation7] sm:$0x1] %vm1696, %v1695
    // Predicated region
    $region30: #{tpu_custom_call.1} parent=1 // pred_check
      _
    $region31: #{tpu_custom_call.1} parent=1 // pred_check_branch
      %1699 = sbr.rel (0) target = $region33
    $region32: #{tpu_custom_call.1} parent=1 // pred_region
      %s1701 = ssub.s32 16, 16
      %1702 = vsyncadd [#allocation4], %s1701
      %s1704 = sshll.u32 [#allocation7], 4
      %s1705 = int_to_ptr.vmem [resolvable:$true] %s1704
      %1707 = dma.vmem_to_hbm [thread:$0]  %s1705, 16, %s4, [#allocation4]
    $region33: #{tpu_custom_call.1} parent=1 // pred_fallthru
      _
    // Predicated region
    $region34: #{tpu_custom_call.1} parent=1 // pred_check
      _
    $region35: #{tpu_custom_call.1} parent=1 // pred_check_branch
      %1709 = sbr.rel (0) target = $region37
    $region36: #{tpu_custom_call.1} parent=1 // pred_region
      %1710 = dma.done [#allocation4], 16
    $region37: #{tpu_custom_call.1} parent=1 // pred_fallthru
      _
    %1711 = vsyncpa [#allocation3], 1
    %1712 = vsyncpa [#allocation6], 1
    %1713 = vsyncpa [#allocation4], 1

</llo_original>
